<compile_context>
chip_gen: v5e
topology: v5e:2x2
jax: 0.10.0
libtpu: 0.0.40
codegen_flags: <defaults>
</compile_context>

<pallas_src>
import jax
import jax.numpy as jnp
from jax.experimental import pallas as pl
from jax.experimental.pallas import tpu as pltpu


# --------------------------------------------------------------------------- #
# Kernel
# --------------------------------------------------------------------------- #
def _upsample_conv_kernel(x_hbm, w_ref, o_ref, xbuf, sem):
    # x_hbm : (N, D+2, H+2, Kpad)        original-res, zero-padded, ones at K0 (HBM)
    # w_ref : (9, Kpad, W*8*Cout)        banded polyphase weights (+bias row, VMEM)
    # o_ref : (1, TD*H, W*8*Cout)        output slab (lane-dense last dim)
    # xbuf  : (2, TD+2, H+2, Kpad)       double-buffered halo'd input slabs
    # sem   : DMA semaphores, one per slot
    n = pl.program_id(0)
    sd = pl.program_id(1)
    ns = pl.num_programs(1)

    _, td_p2, hp, kpad = xbuf.shape
    td = td_p2 - 2
    hh = hp - 2
    m = td * hh

    slot = sd % 2

    def start_fetch(slab_idx, dst_slot):
        d0 = pl.multiple_of(slab_idx * td, td)
        pltpu.make_async_copy(x_hbm.at[n, pl.ds(d0, td_p2)],
                              xbuf.at[dst_slot], sem.at[dst_slot]).start()

    # First slab of this batch element: issue its own DMA (no cross-n prefetch,
    # keeps the kernel correct under megacore sharding of the batch axis).
    @pl.when(sd == 0)
    def _():
        start_fetch(0, 0)

    # Wait for the current slot (descriptor only needs matching sizes).
    pltpu.make_async_copy(x_hbm.at[n, pl.ds(0, td_p2)],
                          xbuf.at[slot], sem.at[slot]).wait()

    # Prefetch the next slab of this batch element into the other slot.
    @pl.when(sd + 1 < ns)
    def _():
        start_fetch(sd + 1, 1 - slot)

    xcur = xbuf.at[slot]

    # 9 (d,h)-offset taps; w-taps + input channels + bias are pre-folded into
    # the banded weight.  The h-shift is hoisted: one relayout load per b, the
    # depth tap is then a leading-dim slice + merge (no extra copy).
    acc = None
    for b in range(3):                       # height offset (hoisted load)
        yb = xcur[:, b:b + hh, :]            # (TD+2, H, Kpad)
        for a in range(3):                   # depth offset (cheap slice)
            xk = yb[a:a + td].reshape(m, kpad)
            part = jnp.dot(xk, w_ref[a * 3 + b],
                           preferred_element_type=jnp.float32)
            acc = part if acc is None else acc + part

    o_ref[...] = acc[None].astype(o_ref.dtype)


# --------------------------------------------------------------------------- #
# Tiling / VMEM heuristics
# --------------------------------------------------------------------------- #
def _vmem_capacity_bytes():
    try:
        info = pltpu.get_tpu_info()
        cap = getattr(info, "vmem_capacity_bytes", None)
        if cap:
            return int(cap)
    except Exception:
        pass
    return 64 * 1024 * 1024  # conservative (v7x per-TC)


def _pick_slab(d, hp, kpad, h, n_lane, in_bytes, out_bytes, budget, min_slabs):
    """Largest divisor of D whose per-step VMEM footprint fits `budget`.
    The footprint accounts for the double-buffered input slab, the pipelined
    output block, the resident weights (x2 pipeline buffers), the f32
    accumulator and the 3 hoisted h-slice copies."""
    best = 1
    for td in range(1, d + 1):
        if d % td:
            continue
        in_slab = 2 * (td + 2) * hp * kpad * in_bytes
        out_blk = 2 * td * h * n_lane * out_bytes
        wband_b = 2 * 9 * kpad * n_lane * in_bytes
        acc_b = td * h * n_lane * 4
        taps_b = 3 * (td + 2) * h * kpad * in_bytes
        if in_slab + out_blk + wband_b + acc_b + taps_b <= budget:
            best = td
    if min_slabs > 1 and d > 1:
        cap = max(1, d // min_slabs)
        while cap > 1 and d % cap:
            cap -= 1
        best = min(best, cap)
    return best


# --------------------------------------------------------------------------- #
# Layer factory: fold weights once, return a jitted forward closure
# --------------------------------------------------------------------------- #
def make_upsample(weight, bias, *, spatial, compute_dtype=jnp.float32,
                  out_dtype=None, batch_hint=2):
    """Pallas equivalent of Upsample (nearest x2 then Conv3d k=3, pad=1).

    weight : (Cout, Cin, 3, 3, 3)  PyTorch Conv3d layout
    bias   : (Cout,)
    spatial: (D, H, W) of the *input* tensor
    Returns forward(x, time_emb, y) -> (N, Cout, 2D, 2H, 2W).
    """
    D, H, W = spatial
    Cout, Cin, k0, k1, k2 = weight.shape
    assert (k0, k1, k2) == (3, 3, 3)

    Dp, Hp, Wp = D + 2, H + 2, W + 2
    K0 = Wp * Cin                              # live contraction rows
    Kpad = ((K0 + 1 + 127) // 128) * 128       # +1 bias/ones column, lane-pad
    n_lane = 8 * W * Cout                      # lanes: (pd, ph, w, pw, cout)

    # ---- polyphase fold: nearest-x2 upsample absorbed into the conv weights --
    # F[p, a, s] = 1 iff conv tap s of output phase p reads input offset a-1.
    F = jnp.array([[[1, 0, 0], [0, 1, 1], [0, 0, 0]],
                   [[0, 0, 0], [1, 1, 0], [0, 0, 1]]], jnp.float32)
    w_f32 = weight.astype(jnp.float32)
    # weff[a, b, c, cin, pd, ph, pw, cout]
    weff = jnp.einsum('pas,qbt,rcu,oistu->abcipqro', F, F, F, w_f32)
    # Fold the w-offset c into a banded (Toeplitz) matrix over the padded W
    # axis; output lane order (pd, ph, w, pw, cout) keeps a 2*W*2*Cout
    # contiguous block for the wrapper-side de-interleave.
    S = (jnp.arange(Wp)[None, :, None] ==
         (jnp.arange(W)[None, None, :] + jnp.arange(3)[:, None, None])
         ).astype(jnp.float32)                                     # (3, Wp, W)
    wband = jnp.einsum('cnw,abcipqro->abnipqwro', S, weff)
    wband = wband.reshape(9, K0, n_lane)
    # Pad contraction rows to Kpad; row K0 of tap (0,0) carries the bias
    # (the input's lane K0 is a ones column), folding bias into the matmul.
    bias_lane = jnp.tile(bias.astype(jnp.float32), 2 * 2 * W * 2)  # cout fastest
    wband_full = jnp.zeros((9, Kpad, n_lane), jnp.float32)
    wband_full = wband_full.at[:, :K0, :].set(wband)
    wband_full = wband_full.at[0, K0, :].set(bias_lane)
    wband_full = wband_full.astype(compute_dtype)

    # ---- generation-aware D-slab tiling --------------------------------------
    in_bytes = jnp.dtype(compute_dtype).itemsize
    out_bytes = jnp.dtype(out_dtype).itemsize if out_dtype is not None else 4
    cap = _vmem_capacity_bytes()
    vmem_limit = min(cap * 3 // 4, 100 * 1024 * 1024)
    budget = int(vmem_limit * 0.85)
    min_slabs = 2 if batch_hint < 2 else 1     # keep both v7x cores fed at N=1
    TD = _pick_slab(D, Hp, Kpad, H, n_lane, in_bytes, out_bytes, budget,
                    min_slabs)
    NS = D // TD

    def forward(x, time_emb=None, y=None):
        del time_emb, y  # ignored, as in the PyTorch module
        N = x.shape[0]
        assert x.shape[1:] == (Cin, D, H, W), x.shape
        odtype = out_dtype if out_dtype is not None else x.dtype

        # Original-resolution input: channels-last, zero-pad 1, flatten (W,C),
        # lane-pad to Kpad with a ones column at K0 (bias carrier).
        x_cl = jnp.transpose(x, (0, 2, 3, 4, 1))                   # (N,D,H,W,C)
        x_pad = jnp.pad(x_cl, ((0, 0), (1, 1), (1, 1), (1, 1), (0, 0)))
        x_flat = x_pad.reshape(N, Dp, Hp, K0)
        x_flat = jnp.pad(x_flat, ((0, 0), (0, 0), (0, 0), (0, Kpad - K0)))
        x_flat = x_flat.at[:, :, :, K0].set(1.0)
        x_flat = x_flat.astype(compute_dtype)

        out_flat = pl.pallas_call(
            _upsample_conv_kernel,
            out_shape=jax.ShapeDtypeStruct((N * NS, TD * H, n_lane), odtype),
            grid_spec=pltpu.PrefetchScalarGridSpec(
                num_scalar_prefetch=0,
                grid=(N, NS),
                in_specs=[
                    pl.BlockSpec(memory_space=pl.ANY),             # x stays in HBM
                    pl.BlockSpec((9, Kpad, n_lane), lambda n, d: (0, 0, 0)),
                ],
                out_specs=pl.BlockSpec((1, TD * H, n_lane),
                                       lambda n, d: (n * NS + d, 0, 0)),
                scratch_shapes=[
                    pltpu.VMEM((2, TD + 2, Hp, Kpad), compute_dtype),
                    pltpu.SemaphoreType.DMA((2,)),
                ],
            ),
            compiler_params=pltpu.CompilerParams(
                # batch axis parallel (megacore), slab axis sequential so the
                # double-buffer carry across slabs is valid.
                dimension_semantics=("parallel", "arbitrary"),
                vmem_limit_bytes=int(vmem_limit)),
        )(x_flat, wband_full)

        # De-interleave the 8 phases; lanes are (pd, ph, w, pw, cout) so the
        # transpose keeps a 2*W*2*Cout contiguous inner block. NCDHW to match
        # the PyTorch module.
        out = out_flat.reshape(N, NS, TD, H, 2, 2, W, 2, Cout)
        out = jnp.transpose(out, (0, 1, 2, 4, 3, 5, 6, 7, 8))
        out = out.reshape(N, 2 * D, 2 * H, 2 * W, Cout)
        return jnp.transpose(out, (0, 4, 1, 2, 3))

    return jax.jit(forward)


def upsample_forward(x, weight, bias, time_emb=None, y=None, *,
                     compute_dtype=jnp.float32, out_dtype=None):
    """One-shot convenience wrapper (folds weights per call; prefer
    make_upsample to hoist the fold out of the forward path)."""
    N, C, D, H, W = x.shape
    fwd = make_upsample(weight, bias, spatial=(D, H, W),
                        compute_dtype=compute_dtype, out_dtype=out_dtype,
                        batch_hint=N)
    return fwd(x, time_emb, y)


# --------------------------------------------------------------------------- #
# Reference + test
# --------------------------------------------------------------------------- #
def _reference(x, weight, bias):
    """Pure-JAX reference: nearest x2 then Conv3d(k=3, pad=1)."""
    xu = jnp.repeat(jnp.repeat(jnp.repeat(x, 2, axis=2), 2, axis=3), 2, axis=4)
    xu_cl = jnp.transpose(xu, (0, 2, 3, 4, 1))                     # NDHWC
    w_dhwio = jnp.transpose(weight, (2, 3, 4, 1, 0))               # DHWIO
    out = jax.lax.conv_general_dilated(
        xu_cl, w_dhwio, window_strides=(1, 1, 1), padding="SAME",
        dimension_numbers=("NDHWC", "DHWIO", "NDHWC"))
    out = out + bias[None, None, None, None, :]
    return jnp.transpose(out, (0, 4, 1, 2, 3))                     # back to NC...


if __name__ == "__main__":
    key = jax.random.PRNGKey(0)
    kx, kw_, kb = jax.random.split(key, 3)

    N, C, S = 2, 4, 8  # input spatial 8^3 -> output 16^3
    x = jax.random.normal(kx, (N, C, S, S, S), dtype=jnp.float32)
    # synthetic Conv3d parameters (shapes from nn.Conv3d(C, C, 3, padding=1))
    weight = jax.random.normal(kw_, (C, C, 3, 3, 3), dtype=jnp.float32) * 0.05
    bias = jax.random.normal(kb, (C,), dtype=jnp.float32) * 0.05

    ref = jax.block_until_ready(_reference(x, weight, bias))

    # f32 path: fold hoisted out of the forward (done once at layer build).
    fwd = make_upsample(weight, bias, spatial=(S, S, S), batch_hint=N)
    out = jax.block_until_ready(fwd(x, None, None))
    assert out.shape == (N, C, 2 * S, 2 * S, 2 * S), out.shape
    assert jnp.allclose(out, ref, atol=1e-3, rtol=1e-3), float(
        jnp.max(jnp.abs(out - ref)))

    # bf16 compute + bf16 output (halves the dominant writeback stream;
    # v5e/v6e HBM + MXU win), f32 accumulation inside the kernel.
    fwd_bf16 = make_upsample(weight, bias, spatial=(S, S, S),
                             compute_dtype=jnp.bfloat16,
                             out_dtype=jnp.bfloat16, batch_hint=N)
    out_bf16 = jax.block_until_ready(fwd_bf16(x, None, None))
    assert out_bf16.dtype == jnp.bfloat16
    assert jnp.allclose(out_bf16.astype(jnp.float32), ref,
                        atol=5e-2, rtol=5e-2), float(
        jnp.max(jnp.abs(out_bf16.astype(jnp.float32) - ref)))

    # convenience wrapper (per-call fold) still works
    out2 = jax.block_until_ready(upsample_forward(x, weight, bias))
    assert jnp.allclose(out2, ref, atol=1e-3, rtol=1e-3)

    print("KERNEL_OK")
</pallas_src>

<mosaic_0001>
module attributes {stable_mosaic.version = 11 : i64} {
  func.func @_upsample_conv_kernel(%arg0: i32, %arg1: i32, %arg2: memref<2x10x10x128xf32, #tpu.memory_space<any>>, %arg3: memref<9x128x256xf32, #tpu.memory_space<vmem>>, %arg4: memref<1x64x256xf32, #tpu.memory_space<vmem>>, %arg5: memref<2x10x10x128xf32, #tpu.memory_space<vmem>>, %arg6: memref<2x!tpu.dma_semaphore, #tpu.memory_space<semaphore_mem>>) attributes {dimension_semantics = [#tpu.dimension_semantics<parallel>, #tpu.dimension_semantics<arbitrary>], iteration_bounds = array<i64: 2, 1>, scalar_prefetch = 0 : i64, scratch_operands = 2 : i64, tpu.core_type = #tpu.core_type<tc>, window_params = [{}, {pipeline_mode = #tpu.pipeline_mode<synchronous>, transform_indices = @transform_1, window_bounds = array<i64: 9, 128, 256>}, {transform_indices = @transform_2, window_bounds = array<i64: 1, 64, 256>}]} {
    %c2_i32 = arith.constant 2 : i32
    %c0_i32 = arith.constant 0 : i32
    %0 = arith.cmpi eq, %c2_i32, %c0_i32 : i32
    %c1_i32 = arith.constant 1 : i32
    %1 = arith.select %0, %c1_i32, %c2_i32 : i32
    %2 = arith.remsi %arg1, %1 : i32
    %c0_i32_0 = arith.constant 0 : i32
    %3 = arith.cmpi ne, %2, %c0_i32_0 : i32
    %c0_i32_1 = arith.constant 0 : i32
    %4 = arith.cmpi slt, %2, %c0_i32_1 : i32
    %c0_i32_2 = arith.constant 0 : i32
    %5 = arith.cmpi slt, %1, %c0_i32_2 : i32
    %6 = arith.xori %4, %5 : i1
    %7 = arith.andi %6, %3 : i1
    %8 = arith.addi %2, %1 : i32
    %9 = arith.select %7, %8, %2 : i32
    %c0_i32_3 = arith.constant 0 : i32
    %10 = arith.cmpi eq, %arg1, %c0_i32_3 : i32
    %11 = arith.extui %10 : i1 to i32
    %c0_i32_4 = arith.constant 0 : i32
    %12 = arith.cmpi ne, %11, %c0_i32_4 : i32
    scf.if %12 {
      %c0_i32_61 = arith.constant 0 : i32
      %87 = tpu.assume_multiple %c0_i32_61, 8 : i32
      %c0_i32_62 = arith.constant 0 : i32
      %c0_i32_63 = arith.constant 0 : i32
      %c0_i32_64 = arith.constant 0 : i32
      %c0_i32_65 = arith.constant 0 : i32
      %88 = tpu.memref_slice %arg2[%arg0, %87, %c0_i32_64, %c0_i32_65] : memref<2x10x10x128xf32, #tpu.memory_space<any>> -> memref<1x10x10x128xf32, #tpu.memory_space<any>>
      %89 = tpu.memref_squeeze %88 : memref<1x10x10x128xf32, #tpu.memory_space<any>> -> memref<10x10x128xf32, #tpu.memory_space<any>>
      %c0_i32_66 = arith.constant 0 : i32
      %c0_i32_67 = arith.constant 0 : i32
      %c0_i32_68 = arith.constant 0 : i32
      %90 = tpu.memref_slice %arg5[%c0_i32_62, %c0_i32_66, %c0_i32_67, %c0_i32_68] : memref<2x10x10x128xf32, #tpu.memory_space<vmem>> -> memref<1x10x10x128xf32, #tpu.memory_space<vmem>>
      %91 = tpu.memref_squeeze %90 : memref<1x10x10x128xf32, #tpu.memory_space<vmem>> -> memref<10x10x128xf32, #tpu.memory_space<vmem>>
      %92 = tpu.memref_slice %arg6[%c0_i32_63] : memref<2x!tpu.dma_semaphore, #tpu.memory_space<semaphore_mem>> -> memref<1x!tpu.dma_semaphore, #tpu.memory_space<semaphore_mem>>
      %93 = tpu.memref_squeeze %92 : memref<1x!tpu.dma_semaphore, #tpu.memory_space<semaphore_mem>> -> memref<!tpu.dma_semaphore, #tpu.memory_space<semaphore_mem>>
      tpu.enqueue_dma source(%89 : memref<10x10x128xf32, #tpu.memory_space<any>>) target(%91 : memref<10x10x128xf32, #tpu.memory_space<vmem>>) target_semaphore(%93 : memref<!tpu.dma_semaphore, #tpu.memory_space<semaphore_mem>>)
    } else {
    }
    %c0_i32_5 = arith.constant 0 : i32
    %c0_i32_6 = arith.constant 0 : i32
    %c0_i32_7 = arith.constant 0 : i32
    %13 = tpu.memref_slice %arg2[%arg0, %c0_i32_5, %c0_i32_6, %c0_i32_7] : memref<2x10x10x128xf32, #tpu.memory_space<any>> -> memref<1x10x10x128xf32, #tpu.memory_space<any>>
    %14 = tpu.memref_squeeze %13 : memref<1x10x10x128xf32, #tpu.memory_space<any>> -> memref<10x10x128xf32, #tpu.memory_space<any>>
    %c0_i32_8 = arith.constant 0 : i32
    %c0_i32_9 = arith.constant 0 : i32
    %c0_i32_10 = arith.constant 0 : i32
    %15 = tpu.memref_slice %arg5[%9, %c0_i32_8, %c0_i32_9, %c0_i32_10] : memref<2x10x10x128xf32, #tpu.memory_space<vmem>> -> memref<1x10x10x128xf32, #tpu.memory_space<vmem>>
    %16 = tpu.memref_squeeze %15 : memref<1x10x10x128xf32, #tpu.memory_space<vmem>> -> memref<10x10x128xf32, #tpu.memory_space<vmem>>
    %17 = tpu.memref_slice %arg6[%9] : memref<2x!tpu.dma_semaphore, #tpu.memory_space<semaphore_mem>> -> memref<1x!tpu.dma_semaphore, #tpu.memory_space<semaphore_mem>>
    %18 = tpu.memref_squeeze %17 : memref<1x!tpu.dma_semaphore, #tpu.memory_space<semaphore_mem>> -> memref<!tpu.dma_semaphore, #tpu.memory_space<semaphore_mem>>
    tpu.wait_dma2 semaphore(%18 : memref<!tpu.dma_semaphore, #tpu.memory_space<semaphore_mem>>) src(%14 : memref<10x10x128xf32, #tpu.memory_space<any>>) dst(%16 : memref<10x10x128xf32, #tpu.memory_space<vmem>>)
    %c1_i32_11 = arith.constant 1 : i32
    %19 = arith.addi %arg1, %c1_i32_11 : i32
    %c1_i32_12 = arith.constant 1 : i32
    %20 = arith.cmpi slt, %19, %c1_i32_12 : i32
    %21 = arith.extui %20 : i1 to i32
    %c0_i32_13 = arith.constant 0 : i32
    %22 = arith.cmpi ne, %21, %c0_i32_13 : i32
    scf.if %22 {
      %c1_i32_61 = arith.constant 1 : i32
      %87 = arith.addi %arg1, %c1_i32_61 : i32
      %c1_i32_62 = arith.constant 1 : i32
      %88 = arith.subi %c1_i32_62, %9 : i32
      %c8_i32 = arith.constant 8 : i32
      %89 = arith.muli %87, %c8_i32 : i32
      %90 = tpu.assume_multiple %89, 8 : i32
      %c0_i32_63 = arith.constant 0 : i32
      %c0_i32_64 = arith.constant 0 : i32
      %91 = tpu.memref_slice %arg2[%arg0, %90, %c0_i32_63, %c0_i32_64] : memref<2x10x10x128xf32, #tpu.memory_space<any>> -> memref<1x10x10x128xf32, #tpu.memory_space<any>>
      %92 = tpu.memref_squeeze %91 : memref<1x10x10x128xf32, #tpu.memory_space<any>> -> memref<10x10x128xf32, #tpu.memory_space<any>>
      %c0_i32_65 = arith.constant 0 : i32
      %c0_i32_66 = arith.constant 0 : i32
      %c0_i32_67 = arith.constant 0 : i32
      %93 = tpu.memref_slice %arg5[%88, %c0_i32_65, %c0_i32_66, %c0_i32_67] : memref<2x10x10x128xf32, #tpu.memory_space<vmem>> -> memref<1x10x10x128xf32, #tpu.memory_space<vmem>>
      %94 = tpu.memref_squeeze %93 : memref<1x10x10x128xf32, #tpu.memory_space<vmem>> -> memref<10x10x128xf32, #tpu.memory_space<vmem>>
      %95 = tpu.memref_slice %arg6[%88] : memref<2x!tpu.dma_semaphore, #tpu.memory_space<semaphore_mem>> -> memref<1x!tpu.dma_semaphore, #tpu.memory_space<semaphore_mem>>
      %96 = tpu.memref_squeeze %95 : memref<1x!tpu.dma_semaphore, #tpu.memory_space<semaphore_mem>> -> memref<!tpu.dma_semaphore, #tpu.memory_space<semaphore_mem>>
      tpu.enqueue_dma source(%92 : memref<10x10x128xf32, #tpu.memory_space<any>>) target(%94 : memref<10x10x128xf32, #tpu.memory_space<vmem>>) target_semaphore(%96 : memref<!tpu.dma_semaphore, #tpu.memory_space<semaphore_mem>>)
    } else {
    }
    %c0_i32_14 = arith.constant 0 : i32
    %c0_i32_15 = arith.constant 0 : i32
    %c0_i32_16 = arith.constant 0 : i32
    %23 = tpu.memref_slice %arg5[%9, %c0_i32_14, %c0_i32_15, %c0_i32_16] : memref<2x10x10x128xf32, #tpu.memory_space<vmem>> -> memref<1x10x10x128xf32, #tpu.memory_space<vmem>>
    %24 = tpu.memref_squeeze %23 : memref<1x10x10x128xf32, #tpu.memory_space<vmem>> -> memref<10x10x128xf32, #tpu.memory_space<vmem>>
    %c0 = arith.constant 0 : index
    %c0_17 = arith.constant 0 : index
    %c0_18 = arith.constant 0 : index
    %25 = vector.load %24[%c0, %c0_17, %c0_18] : memref<10x10x128xf32, #tpu.memory_space<vmem>>, vector<10x8x128xf32>
    %26 = vector.extract_strided_slice %25 {offsets = [0, 0, 0], sizes = [8, 8, 128], strides = [1, 1, 1]} : vector<10x8x128xf32> to vector<8x8x128xf32>
    %27 = vector.shape_cast %26 : vector<8x8x128xf32> to vector<64x128xf32>
    %c0_19 = arith.constant 0 : index
    %c0_20 = arith.constant 0 : index
    %c0_21 = arith.constant 0 : index
    %28 = vector.load %arg3[%c0_19, %c0_20, %c0_21] : memref<9x128x256xf32, #tpu.memory_space<vmem>>, vector<1x128x256xf32>
    %29 = vector.shape_cast %28 : vector<1x128x256xf32> to vector<128x256xf32>
    %cst = arith.constant dense<0.000000e+00> : vector<64x256xf32>
    %30 = tpu.matmul %27, %29, %cst {dimension_numbers = #tpu.dot_dimension_numbers<[1], [0], [0], [1], [0, 0, 1, 1], [], []>} : vector<64x128xf32>, vector<128x256xf32>, vector<64x256xf32> -> vector<64x256xf32>
    %31 = vector.extract_strided_slice %25 {offsets = [1, 0, 0], sizes = [8, 8, 128], strides = [1, 1, 1]} : vector<10x8x128xf32> to vector<8x8x128xf32>
    %32 = vector.shape_cast %31 : vector<8x8x128xf32> to vector<64x128xf32>
    %c3 = arith.constant 3 : index
    %c0_22 = arith.constant 0 : index
    %c0_23 = arith.constant 0 : index
    %33 = vector.load %arg3[%c3, %c0_22, %c0_23] : memref<9x128x256xf32, #tpu.memory_space<vmem>>, vector<1x128x256xf32>
    %34 = vector.shape_cast %33 : vector<1x128x256xf32> to vector<128x256xf32>
    %cst_24 = arith.constant dense<0.000000e+00> : vector<64x256xf32>
    %35 = tpu.matmul %32, %34, %cst_24 {dimension_numbers = #tpu.dot_dimension_numbers<[1], [0], [0], [1], [0, 0, 1, 1], [], []>} : vector<64x128xf32>, vector<128x256xf32>, vector<64x256xf32> -> vector<64x256xf32>
    %36 = arith.addf %30, %35 : vector<64x256xf32>
    %37 = vector.extract_strided_slice %25 {offsets = [2, 0, 0], sizes = [8, 8, 128], strides = [1, 1, 1]} : vector<10x8x128xf32> to vector<8x8x128xf32>
    %38 = vector.shape_cast %37 : vector<8x8x128xf32> to vector<64x128xf32>
    %c6 = arith.constant 6 : index
    %c0_25 = arith.constant 0 : index
    %c0_26 = arith.constant 0 : index
    %39 = vector.load %arg3[%c6, %c0_25, %c0_26] : memref<9x128x256xf32, #tpu.memory_space<vmem>>, vector<1x128x256xf32>
    %40 = vector.shape_cast %39 : vector<1x128x256xf32> to vector<128x256xf32>
    %cst_27 = arith.constant dense<0.000000e+00> : vector<64x256xf32>
    %41 = tpu.matmul %38, %40, %cst_27 {dimension_numbers = #tpu.dot_dimension_numbers<[1], [0], [0], [1], [0, 0, 1, 1], [], []>} : vector<64x128xf32>, vector<128x256xf32>, vector<64x256xf32> -> vector<64x256xf32>
    %42 = arith.addf %36, %41 : vector<64x256xf32>
    %c0_i32_28 = arith.constant 0 : i32
    %c0_i32_29 = arith.constant 0 : i32
    %c0_i32_30 = arith.constant 0 : i32
    %43 = tpu.memref_slice %arg5[%9, %c0_i32_28, %c0_i32_29, %c0_i32_30] : memref<2x10x10x128xf32, #tpu.memory_space<vmem>> -> memref<1x10x10x128xf32, #tpu.memory_space<vmem>>
    %44 = tpu.memref_squeeze %43 : memref<1x10x10x128xf32, #tpu.memory_space<vmem>> -> memref<10x10x128xf32, #tpu.memory_space<vmem>>
    %c0_31 = arith.constant 0 : index
    %c1 = arith.constant 1 : index
    %c0_32 = arith.constant 0 : index
    %45 = vector.load %44[%c0_31, %c1, %c0_32] : memref<10x10x128xf32, #tpu.memory_space<vmem>>, vector<10x8x128xf32>
    %46 = vector.extract_strided_slice %45 {offsets = [0, 0, 0], sizes = [8, 8, 128], strides = [1, 1, 1]} : vector<10x8x128xf32> to vector<8x8x128xf32>
    %47 = vector.shape_cast %46 : vector<8x8x128xf32> to vector<64x128xf32>
    %c1_33 = arith.constant 1 : index
    %c0_34 = arith.constant 0 : index
    %c0_35 = arith.constant 0 : index
    %48 = vector.load %arg3[%c1_33, %c0_34, %c0_35] : memref<9x128x256xf32, #tpu.memory_space<vmem>>, vector<1x128x256xf32>
    %49 = vector.shape_cast %48 : vector<1x128x256xf32> to vector<128x256xf32>
    %cst_36 = arith.constant dense<0.000000e+00> : vector<64x256xf32>
    %50 = tpu.matmul %47, %49, %cst_36 {dimension_numbers = #tpu.dot_dimension_numbers<[1], [0], [0], [1], [0, 0, 1, 1], [], []>} : vector<64x128xf32>, vector<128x256xf32>, vector<64x256xf32> -> vector<64x256xf32>
    %51 = arith.addf %42, %50 : vector<64x256xf32>
    %52 = vector.extract_strided_slice %45 {offsets = [1, 0, 0], sizes = [8, 8, 128], strides = [1, 1, 1]} : vector<10x8x128xf32> to vector<8x8x128xf32>
    %53 = vector.shape_cast %52 : vector<8x8x128xf32> to vector<64x128xf32>
    %c4 = arith.constant 4 : index
    %c0_37 = arith.constant 0 : index
    %c0_38 = arith.constant 0 : index
    %54 = vector.load %arg3[%c4, %c0_37, %c0_38] : memref<9x128x256xf32, #tpu.memory_space<vmem>>, vector<1x128x256xf32>
    %55 = vector.shape_cast %54 : vector<1x128x256xf32> to vector<128x256xf32>
    %cst_39 = arith.constant dense<0.000000e+00> : vector<64x256xf32>
    %56 = tpu.matmul %53, %55, %cst_39 {dimension_numbers = #tpu.dot_dimension_numbers<[1], [0], [0], [1], [0, 0, 1, 1], [], []>} : vector<64x128xf32>, vector<128x256xf32>, vector<64x256xf32> -> vector<64x256xf32>
    %57 = arith.addf %51, %56 : vector<64x256xf32>
    %58 = vector.extract_strided_slice %45 {offsets = [2, 0, 0], sizes = [8, 8, 128], strides = [1, 1, 1]} : vector<10x8x128xf32> to vector<8x8x128xf32>
    %59 = vector.shape_cast %58 : vector<8x8x128xf32> to vector<64x128xf32>
    %c7 = arith.constant 7 : index
    %c0_40 = arith.constant 0 : index
    %c0_41 = arith.constant 0 : index
    %60 = vector.load %arg3[%c7, %c0_40, %c0_41] : memref<9x128x256xf32, #tpu.memory_space<vmem>>, vector<1x128x256xf32>
    %61 = vector.shape_cast %60 : vector<1x128x256xf32> to vector<128x256xf32>
    %cst_42 = arith.constant dense<0.000000e+00> : vector<64x256xf32>
    %62 = tpu.matmul %59, %61, %cst_42 {dimension_numbers = #tpu.dot_dimension_numbers<[1], [0], [0], [1], [0, 0, 1, 1], [], []>} : vector<64x128xf32>, vector<128x256xf32>, vector<64x256xf32> -> vector<64x256xf32>
    %63 = arith.addf %57, %62 : vector<64x256xf32>
    %c0_i32_43 = arith.constant 0 : i32
    %c0_i32_44 = arith.constant 0 : i32
    %c0_i32_45 = arith.constant 0 : i32
    %64 = tpu.memref_slice %arg5[%9, %c0_i32_43, %c0_i32_44, %c0_i32_45] : memref<2x10x10x128xf32, #tpu.memory_space<vmem>> -> memref<1x10x10x128xf32, #tpu.memory_space<vmem>>
    %65 = tpu.memref_squeeze %64 : memref<1x10x10x128xf32, #tpu.memory_space<vmem>> -> memref<10x10x128xf32, #tpu.memory_space<vmem>>
    %c0_46 = arith.constant 0 : index
    %c2 = arith.constant 2 : index
    %c0_47 = arith.constant 0 : index
    %66 = vector.load %65[%c0_46, %c2, %c0_47] : memref<10x10x128xf32, #tpu.memory_space<vmem>>, vector<10x8x128xf32>
    %67 = vector.extract_strided_slice %66 {offsets = [0, 0, 0], sizes = [8, 8, 128], strides = [1, 1, 1]} : vector<10x8x128xf32> to vector<8x8x128xf32>
    %68 = vector.shape_cast %67 : vector<8x8x128xf32> to vector<64x128xf32>
    %c2_48 = arith.constant 2 : index
    %c0_49 = arith.constant 0 : index
    %c0_50 = arith.constant 0 : index
    %69 = vector.load %arg3[%c2_48, %c0_49, %c0_50] : memref<9x128x256xf32, #tpu.memory_space<vmem>>, vector<1x128x256xf32>
    %70 = vector.shape_cast %69 : vector<1x128x256xf32> to vector<128x256xf32>
    %cst_51 = arith.constant dense<0.000000e+00> : vector<64x256xf32>
    %71 = tpu.matmul %68, %70, %cst_51 {dimension_numbers = #tpu.dot_dimension_numbers<[1], [0], [0], [1], [0, 0, 1, 1], [], []>} : vector<64x128xf32>, vector<128x256xf32>, vector<64x256xf32> -> vector<64x256xf32>
    %72 = arith.addf %63, %71 : vector<64x256xf32>
    %73 = vector.extract_strided_slice %66 {offsets = [1, 0, 0], sizes = [8, 8, 128], strides = [1, 1, 1]} : vector<10x8x128xf32> to vector<8x8x128xf32>
    %74 = vector.shape_cast %73 : vector<8x8x128xf32> to vector<64x128xf32>
    %c5 = arith.constant 5 : index
    %c0_52 = arith.constant 0 : index
    %c0_53 = arith.constant 0 : index
    %75 = vector.load %arg3[%c5, %c0_52, %c0_53] : memref<9x128x256xf32, #tpu.memory_space<vmem>>, vector<1x128x256xf32>
    %76 = vector.shape_cast %75 : vector<1x128x256xf32> to vector<128x256xf32>
    %cst_54 = arith.constant dense<0.000000e+00> : vector<64x256xf32>
    %77 = tpu.matmul %74, %76, %cst_54 {dimension_numbers = #tpu.dot_dimension_numbers<[1], [0], [0], [1], [0, 0, 1, 1], [], []>} : vector<64x128xf32>, vector<128x256xf32>, vector<64x256xf32> -> vector<64x256xf32>
    %78 = arith.addf %72, %77 : vector<64x256xf32>
    %79 = vector.extract_strided_slice %66 {offsets = [2, 0, 0], sizes = [8, 8, 128], strides = [1, 1, 1]} : vector<10x8x128xf32> to vector<8x8x128xf32>
    %80 = vector.shape_cast %79 : vector<8x8x128xf32> to vector<64x128xf32>
    %c8 = arith.constant 8 : index
    %c0_55 = arith.constant 0 : index
    %c0_56 = arith.constant 0 : index
    %81 = vector.load %arg3[%c8, %c0_55, %c0_56] : memref<9x128x256xf32, #tpu.memory_space<vmem>>, vector<1x128x256xf32>
    %82 = vector.shape_cast %81 : vector<1x128x256xf32> to vector<128x256xf32>
    %cst_57 = arith.constant dense<0.000000e+00> : vector<64x256xf32>
    %83 = tpu.matmul %80, %82, %cst_57 {dimension_numbers = #tpu.dot_dimension_numbers<[1], [0], [0], [1], [0, 0, 1, 1], [], []>} : vector<64x128xf32>, vector<128x256xf32>, vector<64x256xf32> -> vector<64x256xf32>
    %84 = arith.addf %78, %83 : vector<64x256xf32>
    %85 = vector.shape_cast %84 : vector<64x256xf32> to vector<1x64x256xf32>
    %c0_58 = arith.constant 0 : index
    %c0_59 = arith.constant 0 : index
    %c0_60 = arith.constant 0 : index
    %86 = vector.load %arg4[%c0_58, %c0_59, %c0_60] : memref<1x64x256xf32, #tpu.memory_space<vmem>>, vector<1x64x256xf32>
    tpu.vector_store %arg4[%c0_58, %c0_59, %c0_60], %85 {strides = array<i32>} : memref<1x64x256xf32, #tpu.memory_space<vmem>>, vector<1x64x256xf32>,
    return
  }
  func.func @transform_1(%arg0: i32, %arg1: i32) -> (i32, i32, i32) {
    %c0_i32 = arith.constant 0 : i32
    %c0_i32_0 = arith.constant 0 : i32
    %c0_i32_1 = arith.constant 0 : i32
    %c0_i32_2 = arith.constant 0 : i32
    return %c0_i32, %c0_i32_0, %c0_i32_1 : i32, i32, i32
  }
  func.func @transform_2(%arg0: i32, %arg1: i32) -> (i32, i32, i32) {
    %c1_i32 = arith.constant 1 : i32
    %0 = arith.muli %arg0, %c1_i32 : i32
    %1 = arith.addi %0, %arg1 : i32
    %c0_i32 = arith.constant 0 : i32
    %c0_i32_0 = arith.constant 0 : i32
    %c0_i32_1 = arith.constant 0 : i32
    return %1, %c0_i32, %c0_i32_0 : i32, i32, i32
  }
}

</mosaic_0001>

<llo_original>
// kernel: forward.1
$region0: #{forward.1}
  #allocation0 [shape = 'u32[]', space=smem, size = 0x4, offset = 0x4, fixed_abs, tag = 'smem constant byte address 0x4 - core index']
  #allocation1 [shape = 'u32[72,128]{1,0:T(1,128)}', space=vmem, size = 0x9000, scoped, tag = 'internal scratch']
  #allocation2 [shape = 'f32[2,10,10,128]{3,2,1,0:T(8,128)}', space=vmem, size = 0x28000, scoped, tag = 'scratch operand']
  #allocation3 [shape = 's32[2]{0}', space=sflag, size = 0x8, scoped, tag = 'scratch operand']
  #allocation4 [shape = 's32[]', space=sflag, size = 0x4, offset = 0, fixed_abs, tag = 'sflag constant byte address 0x0 - dummy sync flag']
  #allocation5 [shape = 's32[]', space=sflag, size = 0x4, offset = 0, fixed_abs, tag = 'sflag constant byte address 0x0 - dummy sync flag']
  %s0 = inlined_call_operand.vmem [shape: f32[2,10,10,128], index: 0, kind: input, shape index: {}]
  %s1 = inlined_call_operand.vmem [shape: f32[9,128,256], index: 1, kind: input, shape index: {}]
  %s2 = inlined_call_operand.vmem [shape: f32[2,64,256], index: 2, kind: output, shape index: {}]
  %s3 = sld [smem:[#allocation0]]
  $region89: #{forward.1} parent=0
    _
  %s5 = ssub.s32 1, %s3
  %s6 = scalar_select 0, %s5, %s3
  loop: start=0, step=1, limit=4
  $region2: #{forward.1} parent=0 // loop_pre_header
    _
  $region3: #{forward.1} parent=0 // loop_header
    %s8 = sphi 0, %s12
    %p9 = scmp.ge.s32.totalorder %s8, 4
    %s15 = sphi 0, %s27
    %s16 = sphi 0, %s23
    %s17 = sphi 0, %s15
    %s18 = sphi 0, %s16
    %s19 = sphi 0, %s17
    %s20 = sphi 0, %s18
    %s28 = sphi 0, %s28
    %s30 = sphi 0, %s28
    %s31 = sphi 0, %s30
    %s45 = sphi 0, %s31
    %s53 = sphi 0, %s55
    %s56 = sphi 0, %s53
    %s57 = sphi 0, %s56
    %s73 = sphi 0, %s57
  $region4: #{forward.1} parent=0 // loop_header_branch
    %11 = sbr.rel (%p9) target = $region8
  $region5: #{forward.1} parent=0 // loop_body
    %s13 = ssub.s32 %s8, 1
    %s14 = ssub.s32 %s8, 2
    %s21 = sadd.s32 1, %s16
    %p22 = scmp.ge.s32.totalorder %s21, 1
    %s23 = scalar_select %p22, 0, %s21
    %s24 = sadd.s32 1, %s15
    %s25 = scalar_select %p22, %s24, %s15
    %p26 = scmp.ge.s32.totalorder %s25, 2
    %s27 = scalar_select %p26, 0, %s25
    %s29 = sadd.s32 %s28, 1
    %p32 = scmp.eq.s32.totalorder %s8, 1
    %p33 = scmp.ne.s32.totalorder %s28, %s30
    %p34 = scmp.eq.s32.totalorder %s8, 0
    %p35 = por %p33, %p34
    %p36 = scmp.ne.s32.totalorder %s28, %s30
    %p37 = scmp.eq.s32.totalorder %s13, 1
    %p38 = por %p36, %p37
    %p39 = scmp.ne.s32.totalorder %s30, %s31
    %p40 = scmp.eq.s32.totalorder %s13, 0
    %p41 = por %p39, %p40
    %p42 = scmp.ne.s32.totalorder %s30, %s31
    %p43 = scmp.eq.s32.totalorder %s14, 1
    %p44 = por %p42, %p43
    %p46 = scmp.ne.s32.totalorder %s31, %s45
    %p47 = scmp.eq.s32.totalorder %s14, 0
    %p48 = por %p46, %p47
    %s49 = sadd.s32 %s15, %s16
    %s50 = sadd.s32 %s27, %s23
    %s51 = ssub.s32 %s49, %s50
    %p52 = scmp.eq.s32.totalorder %s51, 0
    %s54 = sadd.s32 %s53, 1
    %s55 = scalar_select %p52, %s53, %s54
    %p58 = pneg %p52
    %p59 = scmp.eq.s32.totalorder %s8, 1
    %p60 = por %p58, %p59
    %p61 = scmp.ne.s32.totalorder %s53, %s56
    %p62 = scmp.eq.s32.totalorder %s8, 0
    %p63 = por %p61, %p62
    %p64 = scmp.ne.s32.totalorder %s53, %s56
    %p65 = scmp.eq.s32.totalorder %s13, 1
    %p66 = por %p64, %p65
    %p67 = scmp.ne.s32.totalorder %s56, %s57
    %p68 = scmp.eq.s32.totalorder %s13, 0
    %p69 = por %p67, %p68
    %p70 = scmp.ne.s32.totalorder %s56, %s57
    %p71 = scmp.eq.s32.totalorder %s14, 1
    %p72 = por %p70, %p71
    %p74 = scmp.ne.s32.totalorder %s57, %s73
    %p75 = scmp.eq.s32.totalorder %s14, 0
    %p76 = por %p74, %p75
    %p77 = scmp.le.s32.totalorder 1, %s8
    %p78 = scmp.lt.s32.totalorder %s8, 3
    %p79 = pnand %p77, %p78
    %p80 = pneg %p79
    // Predicated region
    $region9: #{forward.1} parent=5 // pred_check
      _
    $region10: #{forward.1} parent=5 // pred_check_branch
      %82 = sbr.rel (%p79) target = $region12
    $region11: #{forward.1} parent=5 // pred_region
      %s83 = ssub.s32 %s8, 1
      // Predicated region
      $region13: #{forward.1} parent=11 // pred_check
        %p84 = pneg %p41
      $region14: #{forward.1} parent=11 // pred_check_branch
        %86 = sbr.rel (%p84) target = $region16
      $region15: #{forward.1} parent=11 // pred_region
        _
      $region16: #{forward.1} parent=11 // pred_fallthru
        _
    $region12: #{forward.1} parent=5 // pred_fallthru
      _
    %p87 = scmp.lt.s32.totalorder %s8, 2
    // Predicated region
    $region17: #{forward.1} parent=5 // pred_check
      %p88 = pneg %p87
    $region18: #{forward.1} parent=5 // pred_check_branch
      %90 = sbr.rel (%p88) target = $region20
    $region19: #{forward.1} parent=5 // pred_region
      _
    $region20: #{forward.1} parent=5 // pred_fallthru
      _
    %p91 = scmp.le.s32.totalorder 1, %s8
    %p92 = scmp.lt.s32.totalorder %s8, 3
    %p93 = pnand %p91, %p92
    %p94 = pneg %p93
    // Predicated region
    $region21: #{forward.1} parent=5 // pred_check
      _
    $region22: #{forward.1} parent=5 // pred_check_branch
      %96 = sbr.rel (%p93) target = $region24
    $region23: #{forward.1} parent=5 // pred_region
      %s97 = ssub.s32 %s8, 1
      %p98 = pneg %p41
      %p99 = pneg %p38
      %p100 = pneg %p69
      %p101 = pneg %p66
      %s102 = sadd.s32 %s17, %s18
      %p103 = scmp.lt.s32.totalorder %s102, 1
      %s104 = scalar_select %p103, %s102, 1
      %s105 = smul.addr %s104, 16
      %s106 = smul.addr %s105, 8
      %s107 = scalar_lea.vmem %s2, %s106
      %s108 = sadd.s32 %s17, %s18
      %p109 = scmp.lt.s32.totalorder %s108, 1
      %s110 = scalar_select %p109, %s108, 1
      %s111 = smul.addr %s110, 16
      %s112 = smul.addr %s111, 8
      %s113 = scalar_lea.vmem %s2, %s112
      %s114 = sadd.s32 %s17, %s18
      %p115 = scmp.lt.s32.totalorder %s18, 0
      %s116 = ssub.s32 0, %s18
      %s117 = scalar_select %p115, %s116, %s18
      %s118 = sand.u32 %s117, 1
      %s119 = ssub.s32 0, %s118
      %s120 = scalar_select %p115, %s119, %s118
      %p121 = scmp.ne.s32.totalorder %s120, 0
      %p122 = scmp.lt.s32.totalorder %s120, 0
      %p123 = pnand %p122, %p121
      %p124 = pneg %p123
      %s125 = sadd.s32 %s120, 2
      %s126 = scalar_select %p124, %s125, %s120
      %p127 = scmp.eq.s32.totalorder %s18, 0
      // Predicated region
      $region25: #{forward.1} parent=23 // pred_check
        %p128 = pneg %p127
      $region26: #{forward.1} parent=23 // pred_check_branch
        %130 = sbr.rel (%p128) target = $region28
      $region27: #{forward.1} parent=23 // pred_region
        %s131 = smul.u32 0, 16
        %s132 = smul.u32 %s17, 160
        %s133 = sadd.s32 %s131, %s132
        %s134 = scalar_lea.vmem %s0, %s133
        // Predicated region
        $region29: #{forward.1} parent=27 // pred_check
          _
        $region30: #{forward.1} parent=27 // pred_check_branch
          %136 = sbr.rel (0) target = $region32
        $region31: #{forward.1} parent=27 // pred_region
          %s137 = scalar_lea.vmem %s134, 8
          %s138 = scalar_lea.vmem [#allocation2], 8
          loop: start=0, step=1, limit=1
          $region33: #{forward.1} parent=31 // loop_pre_header
            _
          $region34: #{forward.1} parent=31 // loop_header
            %s140 = sphi 0, %s144
            %p141 = scmp.ge.s32.totalorder %s140, 1
            %s145 = sphi %s134, %s134
            %s146 = sphi [#allocation2], [#allocation2]
          $region35: #{forward.1} parent=31 // loop_header_branch
            %143 = sbr.rel (%p141) target = $region39
          $region36: #{forward.1} parent=31 // loop_body
            %v147 = vld [vmem:[%s145] sm:$0xff]
            %148 = vst [vmem:[%s146] sm:$0xff] %v147
            %v149 = vld [vmem:[%s145 + $0x10] sm:$0xff]
            %150 = vst [vmem:[%s146 + $0x10] sm:$0xff] %v149
            %v151 = vld [vmem:[%s145 + $0x20] sm:$0xff]
            %152 = vst [vmem:[%s146 + $0x20] sm:$0xff] %v151
            %v153 = vld [vmem:[%s145 + $0x30] sm:$0xff]
            %154 = vst [vmem:[%s146 + $0x30] sm:$0xff] %v153
            %v155 = vld [vmem:[%s145 + $0x40] sm:$0xff]
            %156 = vst [vmem:[%s146 + $0x40] sm:$0xff] %v155
            %v157 = vld [vmem:[%s145 + $0x50] sm:$0xff]
            %158 = vst [vmem:[%s146 + $0x50] sm:$0xff] %v157
            %v159 = vld [vmem:[%s145 + $0x60] sm:$0xff]
            %160 = vst [vmem:[%s146 + $0x60] sm:$0xff] %v159
            %v161 = vld [vmem:[%s145 + $0x70] sm:$0xff]
            %162 = vst [vmem:[%s146 + $0x70] sm:$0xff] %v161
            %v163 = vld [vmem:[%s145 + $0x80] sm:$0xff]
            %164 = vst [vmem:[%s146 + $0x80] sm:$0xff] %v163
            %v165 = vld [vmem:[%s145 + $0x90] sm:$0xff]
            %166 = vst [vmem:[%s146 + $0x90] sm:$0xff] %v165
          $region37: #{forward.1} parent=31 // loop_footer
            %s144 = sadd.s32 1, %s140
          $region38: #{forward.1} parent=31 // loop_footer_branch
            %139 = sbr.rel target = $region34
          $region39: #{forward.1} parent=31 // loop_exit
            _
          %s168 = ssub.s32 4, 1
          loop: start=0, step=1, limit=1
          $region40: #{forward.1} parent=31 // loop_pre_header
            _
          $region41: #{forward.1} parent=31 // loop_header
            %s170 = sphi 0, %s174
            %p171 = scmp.ge.s32.totalorder %s170, 1
            %s175 = sphi %s137, %s137
            %s176 = sphi %s138, %s138
          $region42: #{forward.1} parent=31 // loop_header_branch
            %173 = sbr.rel (%p171) target = $region46
          $region43: #{forward.1} parent=31 // loop_body
            %v177 = vld [vmem:[%s175] sm:%s168]
            %178 = vst [vmem:[%s176] sm:%s168] %v177
            %v179 = vld [vmem:[%s175 + $0x10] sm:%s168]
            %180 = vst [vmem:[%s176 + $0x10] sm:%s168] %v179
            %v181 = vld [vmem:[%s175 + $0x20] sm:%s168]
            %182 = vst [vmem:[%s176 + $0x20] sm:%s168] %v181
            %v183 = vld [vmem:[%s175 + $0x30] sm:%s168]
            %184 = vst [vmem:[%s176 + $0x30] sm:%s168] %v183
            %v185 = vld [vmem:[%s175 + $0x40] sm:%s168]
            %186 = vst [vmem:[%s176 + $0x40] sm:%s168] %v185
            %v187 = vld [vmem:[%s175 + $0x50] sm:%s168]
            %188 = vst [vmem:[%s176 + $0x50] sm:%s168] %v187
            %v189 = vld [vmem:[%s175 + $0x60] sm:%s168]
            %190 = vst [vmem:[%s176 + $0x60] sm:%s168] %v189
            %v191 = vld [vmem:[%s175 + $0x70] sm:%s168]
            %192 = vst [vmem:[%s176 + $0x70] sm:%s168] %v191
            %v193 = vld [vmem:[%s175 + $0x80] sm:%s168]
            %194 = vst [vmem:[%s176 + $0x80] sm:%s168] %v193
            %v195 = vld [vmem:[%s175 + $0x90] sm:%s168]
            %196 = vst [vmem:[%s176 + $0x90] sm:%s168] %v195
          $region44: #{forward.1} parent=31 // loop_footer
            %s174 = sadd.s32 1, %s170
          $region45: #{forward.1} parent=31 // loop_footer_branch
            %169 = sbr.rel target = $region41
          $region46: #{forward.1} parent=31 // loop_exit
            _
        $region32: #{forward.1} parent=27 // pred_fallthru
          _
        // Predicated region
        $region47: #{forward.1} parent=27 // pred_check
          _
        $region48: #{forward.1} parent=27 // pred_check_branch
          %199 = sbr.rel (0) target = $region50
        $region49: #{forward.1} parent=27 // pred_region
          %200 = vsyncadd [#allocation3], 1600
        $region50: #{forward.1} parent=27 // pred_fallthru
          _
      $region28: #{forward.1} parent=23 // pred_fallthru
        _
      %s201 = smul.u32 %s126, 160
      %s202 = scalar_lea.vmem [#allocation2], %s201
      %s203 = scalar_lea.sflag [#allocation3], %s126
      %s204 = smul.u32 10, 10
      %s205 = smul.u32 %s204, 1
      %s206 = sshll.u32 %s205, 4
      %207 = dma.done %s203, %s206
      %s208 = sadd.s32 %s18, 1
      %p209 = scmp.lt.s32.totalorder %s208, 1
      // Predicated region
      $region51: #{forward.1} parent=23 // pred_check
        %p210 = pneg %p209
      $region52: #{forward.1} parent=23 // pred_check_branch
        %212 = sbr.rel (%p210) target = $region54
      $region53: #{forward.1} parent=23 // pred_region
        %s213 = ssub.s32 1, %s126
        %s214 = smul.u32 %s208, 8
        %s215 = smul.u32 %s214, 16
        %s216 = smul.u32 %s17, 160
        %s217 = sadd.s32 %s215, %s216
        %s218 = scalar_lea.vmem %s0, %s217
        %s219 = smul.u32 %s213, 160
        %s220 = scalar_lea.vmem [#allocation2], %s219
        %s221 = scalar_lea.sflag [#allocation3], %s213
        // Predicated region
        $region55: #{forward.1} parent=53 // pred_check
          _
        $region56: #{forward.1} parent=53 // pred_check_branch
          %223 = sbr.rel (0) target = $region58
        $region57: #{forward.1} parent=53 // pred_region
          %s224 = scalar_lea.vmem %s218, 8
          %s225 = scalar_lea.vmem %s220, 8 [#allocation2]
          loop: start=0, step=1, limit=1
          $region59: #{forward.1} parent=57 // loop_pre_header
            _
          $region60: #{forward.1} parent=57 // loop_header
            %s227 = sphi 0, %s231
            %p228 = scmp.ge.s32.totalorder %s227, 1
            %s232 = sphi %s218, %s218
            %s233 = sphi %s220, %s220
          $region61: #{forward.1} parent=57 // loop_header_branch
            %230 = sbr.rel (%p228) target = $region65
          $region62: #{forward.1} parent=57 // loop_body
            %v234 = vld [vmem:[%s232] sm:$0xff]
            %235 = vst [vmem:[%s233] sm:$0xff] %v234
            %v236 = vld [vmem:[%s232 + $0x10] sm:$0xff]
            %237 = vst [vmem:[%s233 + $0x10] sm:$0xff] %v236
            %v238 = vld [vmem:[%s232 + $0x20] sm:$0xff]
            %239 = vst [vmem:[%s233 + $0x20] sm:$0xff] %v238
            %v240 = vld [vmem:[%s232 + $0x30] sm:$0xff]
            %241 = vst [vmem:[%s233 + $0x30] sm:$0xff] %v240
            %v242 = vld [vmem:[%s232 + $0x40] sm:$0xff]
            %243 = vst [vmem:[%s233 + $0x40] sm:$0xff] %v242
            %v244 = vld [vmem:[%s232 + $0x50] sm:$0xff]
            %245 = vst [vmem:[%s233 + $0x50] sm:$0xff] %v244
            %v246 = vld [vmem:[%s232 + $0x60] sm:$0xff]
            %247 = vst [vmem:[%s233 + $0x60] sm:$0xff] %v246
            %v248 = vld [vmem:[%s232 + $0x70] sm:$0xff]
            %249 = vst [vmem:[%s233 + $0x70] sm:$0xff] %v248
            %v250 = vld [vmem:[%s232 + $0x80] sm:$0xff]
            %251 = vst [vmem:[%s233 + $0x80] sm:$0xff] %v250
            %v252 = vld [vmem:[%s232 + $0x90] sm:$0xff]
            %253 = vst [vmem:[%s233 + $0x90] sm:$0xff] %v252
          $region63: #{forward.1} parent=57 // loop_footer
            %s231 = sadd.s32 1, %s227
          $region64: #{forward.1} parent=57 // loop_footer_branch
            %226 = sbr.rel target = $region60
          $region65: #{forward.1} parent=57 // loop_exit
            _
          %s255 = ssub.s32 4, 1
          loop: start=0, step=1, limit=1
          $region66: #{forward.1} parent=57 // loop_pre_header
            _
          $region67: #{forward.1} parent=57 // loop_header
            %s257 = sphi 0, %s261
            %p258 = scmp.ge.s32.totalorder %s257, 1
            %s262 = sphi %s224, %s224
            %s263 = sphi %s225, %s225
          $region68: #{forward.1} parent=57 // loop_header_branch
            %260 = sbr.rel (%p258) target = $region72
          $region69: #{forward.1} parent=57 // loop_body
            %v264 = vld [vmem:[%s262] sm:%s255]
            %265 = vst [vmem:[%s263] sm:%s255] %v264
            %v266 = vld [vmem:[%s262 + $0x10] sm:%s255]
            %267 = vst [vmem:[%s263 + $0x10] sm:%s255] %v266
            %v268 = vld [vmem:[%s262 + $0x20] sm:%s255]
            %269 = vst [vmem:[%s263 + $0x20] sm:%s255] %v268
            %v270 = vld [vmem:[%s262 + $0x30] sm:%s255]
            %271 = vst [vmem:[%s263 + $0x30] sm:%s255] %v270
            %v272 = vld [vmem:[%s262 + $0x40] sm:%s255]
            %273 = vst [vmem:[%s263 + $0x40] sm:%s255] %v272
            %v274 = vld [vmem:[%s262 + $0x50] sm:%s255]
            %275 = vst [vmem:[%s263 + $0x50] sm:%s255] %v274
            %v276 = vld [vmem:[%s262 + $0x60] sm:%s255]
            %277 = vst [vmem:[%s263 + $0x60] sm:%s255] %v276
            %v278 = vld [vmem:[%s262 + $0x70] sm:%s255]
            %279 = vst [vmem:[%s263 + $0x70] sm:%s255] %v278
            %v280 = vld [vmem:[%s262 + $0x80] sm:%s255]
            %281 = vst [vmem:[%s263 + $0x80] sm:%s255] %v280
            %v282 = vld [vmem:[%s262 + $0x90] sm:%s255]
            %283 = vst [vmem:[%s263 + $0x90] sm:%s255] %v282
          $region70: #{forward.1} parent=57 // loop_footer
            %s261 = sadd.s32 1, %s257
          $region71: #{forward.1} parent=57 // loop_footer_branch
            %256 = sbr.rel target = $region67
          $region72: #{forward.1} parent=57 // loop_exit
            _
        $region58: #{forward.1} parent=53 // pred_fallthru
          _
        // Predicated region
        $region73: #{forward.1} parent=53 // pred_check
          _
        $region74: #{forward.1} parent=53 // pred_check_branch
          %286 = sbr.rel (0) target = $region76
        $region75: #{forward.1} parent=53 // pred_region
          %287 = vsyncadd %s221, 1600
        $region76: #{forward.1} parent=53 // pred_fallthru
          _
      $region54: #{forward.1} parent=23 // pred_fallthru
        _
      %v288 = vld [vmem:[%s202] sm:$0xff]
      %v289 = vld [vmem:[%s202 + $0x10] sm:$0xff]
      %v290 = vld [vmem:[%s202 + $0x20] sm:$0xff]
      %v291 = vld [vmem:[%s202 + $0x30] sm:$0xff]
      %v292 = vld [vmem:[%s202 + $0x40] sm:$0xff]
      %v293 = vld [vmem:[%s202 + $0x50] sm:$0xff]
      %v294 = vld [vmem:[%s202 + $0x60] sm:$0xff]
      %v295 = vld [vmem:[%s202 + $0x70] sm:$0xff]
      %v296 = vld [vmem:[%s202 + $0x80] sm:$0xff]
      %v297 = vld [vmem:[%s202 + $0x90] sm:$0xff]
      %v298 = vld [vmem:[%s1] sm:$0xff]
      %v299 = vld [vmem:[%s1 + $0x8] sm:$0xff]
      %v300 = vld [vmem:[%s1 + $0x10] sm:$0xff]
      %v301 = vld [vmem:[%s1 + $0x18] sm:$0xff]
      %v302 = vld [vmem:[%s1 + $0x20] sm:$0xff]
      %v303 = vld [vmem:[%s1 + $0x28] sm:$0xff]
      %v304 = vld [vmem:[%s1 + $0x30] sm:$0xff]
      %v305 = vld [vmem:[%s1 + $0x38] sm:$0xff]
      %v306 = vld [vmem:[%s1 + $0x40] sm:$0xff]
      %v307 = vld [vmem:[%s1 + $0x48] sm:$0xff]
      %v308 = vld [vmem:[%s1 + $0x50] sm:$0xff]
      %v309 = vld [vmem:[%s1 + $0x58] sm:$0xff]
      %v310 = vld [vmem:[%s1 + $0x60] sm:$0xff]
      %v311 = vld [vmem:[%s1 + $0x68] sm:$0xff]
      %v312 = vld [vmem:[%s1 + $0x70] sm:$0xff]
      %v313 = vld [vmem:[%s1 + $0x78] sm:$0xff]
      %v314 = vld [vmem:[%s1 + $0x80] sm:$0xff]
      %v315 = vld [vmem:[%s1 + $0x88] sm:$0xff]
      %v316 = vld [vmem:[%s1 + $0x90] sm:$0xff]
      %v317 = vld [vmem:[%s1 + $0x98] sm:$0xff]
      %v318 = vld [vmem:[%s1 + $0xa0] sm:$0xff]
      %v319 = vld [vmem:[%s1 + $0xa8] sm:$0xff]
      %v320 = vld [vmem:[%s1 + $0xb0] sm:$0xff]
      %v321 = vld [vmem:[%s1 + $0xb8] sm:$0xff]
      %v322 = vld [vmem:[%s1 + $0xc0] sm:$0xff]
      %v323 = vld [vmem:[%s1 + $0xc8] sm:$0xff]
      %v324 = vld [vmem:[%s1 + $0xd0] sm:$0xff]
      %v325 = vld [vmem:[%s1 + $0xd8] sm:$0xff]
      %v326 = vld [vmem:[%s1 + $0xe0] sm:$0xff]
      %v327 = vld [vmem:[%s1 + $0xe8] sm:$0xff]
      %v328 = vld [vmem:[%s1 + $0xf0] sm:$0xff]
      %v329 = vld [vmem:[%s1 + $0xf8] sm:$0xff]
      %s330 = scalar_lea.vmem %s1, 768
      %v331 = vld [vmem:[%s330] sm:$0xff]
      %v332 = vld [vmem:[%s330 + $0x8] sm:$0xff]
      %v333 = vld [vmem:[%s330 + $0x10] sm:$0xff]
      %v334 = vld [vmem:[%s330 + $0x18] sm:$0xff]
      %v335 = vld [vmem:[%s330 + $0x20] sm:$0xff]
      %v336 = vld [vmem:[%s330 + $0x28] sm:$0xff]
      %v337 = vld [vmem:[%s330 + $0x30] sm:$0xff]
      %v338 = vld [vmem:[%s330 + $0x38] sm:$0xff]
      %v339 = vld [vmem:[%s330 + $0x40] sm:$0xff]
      %v340 = vld [vmem:[%s330 + $0x48] sm:$0xff]
      %v341 = vld [vmem:[%s330 + $0x50] sm:$0xff]
      %v342 = vld [vmem:[%s330 + $0x58] sm:$0xff]
      %v343 = vld [vmem:[%s330 + $0x60] sm:$0xff]
      %v344 = vld [vmem:[%s330 + $0x68] sm:$0xff]
      %v345 = vld [vmem:[%s330 + $0x70] sm:$0xff]
      %v346 = vld [vmem:[%s330 + $0x78] sm:$0xff]
      %v347 = vld [vmem:[%s330 + $0x80] sm:$0xff]
      %v348 = vld [vmem:[%s330 + $0x88] sm:$0xff]
      %v349 = vld [vmem:[%s330 + $0x90] sm:$0xff]
      %v350 = vld [vmem:[%s330 + $0x98] sm:$0xff]
      %v351 = vld [vmem:[%s330 + $0xa0] sm:$0xff]
      %v352 = vld [vmem:[%s330 + $0xa8] sm:$0xff]
      %v353 = vld [vmem:[%s330 + $0xb0] sm:$0xff]
      %v354 = vld [vmem:[%s330 + $0xb8] sm:$0xff]
      %v355 = vld [vmem:[%s330 + $0xc0] sm:$0xff]
      %v356 = vld [vmem:[%s330 + $0xc8] sm:$0xff]
      %v357 = vld [vmem:[%s330 + $0xd0] sm:$0xff]
      %v358 = vld [vmem:[%s330 + $0xd8] sm:$0xff]
      %v359 = vld [vmem:[%s330 + $0xe0] sm:$0xff]
      %v360 = vld [vmem:[%s330 + $0xe8] sm:$0xff]
      %v361 = vld [vmem:[%s330 + $0xf0] sm:$0xff]
      %v362 = vld [vmem:[%s330 + $0xf8] sm:$0xff]
      %363 = vmatpush.msra.mxu0 %v361
      %364 = vmatpush.msra.mxu0 %v359
      %365 = vmatpush.msra.mxu0 %v357
      %366 = vmatpush.msra.mxu0 %v355
      %367 = vmatpush.msra.mxu0 %v353
      %368 = vmatpush.msra.mxu0 %v351
      %369 = vmatpush.msra.mxu0 %v349
      %370 = vmatpush.msra.mxu0 %v347
      %371 = vmatpush.msra.mxu0 %v345
      %372 = vmatpush.msra.mxu0 %v343
      %373 = vmatpush.msra.mxu0 %v341
      %374 = vmatpush.msra.mxu0 %v339
      %375 = vmatpush.msra.mxu0 %v337
      %376 = vmatpush.msra.mxu0 %v335
      %377 = vmatpush.msra.mxu0 %v333
      %378 = vmatpush.msra.mxu0 %v331
      %379 = vmatmul.f32.gmra.mxu0 %v289
      %v380 = vpop.f32.mrf.mxu0
      %v381 = vadd.f32 0.0, %v380
      %382 = vmatmul.f32.gmra.mxu0 %v290
      %v383 = vpop.f32.mrf.mxu0
      %v384 = vadd.f32 0.0, %v383
      %385 = vmatmul.f32.gmra.mxu0 %v291
      %v386 = vpop.f32.mrf.mxu0
      %v387 = vadd.f32 0.0, %v386
      %388 = vmatmul.f32.gmra.mxu0 %v292
      %v389 = vpop.f32.mrf.mxu0
      %v390 = vadd.f32 0.0, %v389
      %391 = vmatmul.f32.gmra.mxu0 %v293
      %v392 = vpop.f32.mrf.mxu0
      %v393 = vadd.f32 0.0, %v392
      %394 = vmatmul.f32.gmra.mxu0 %v294
      %v395 = vpop.f32.mrf.mxu0
      %v396 = vadd.f32 0.0, %v395
      %397 = vmatmul.f32.gmra.mxu0 %v295
      %v398 = vpop.f32.mrf.mxu0
      %v399 = vadd.f32 0.0, %v398
      %400 = vmatmul.f32.gmra.mxu0 %v296
      %v401 = vpop.f32.mrf.mxu0
      %v402 = vadd.f32 0.0, %v401
      %403 = vdwg.mxu0
      %404 = vmatpush.msra.mxu0 %v362
      %405 = vmatpush.msra.mxu0 %v360
      %406 = vmatpush.msra.mxu0 %v358
      %407 = vmatpush.msra.mxu0 %v356
      %408 = vmatpush.msra.mxu0 %v354
      %409 = vmatpush.msra.mxu0 %v352
      %410 = vmatpush.msra.mxu0 %v350
      %411 = vmatpush.msra.mxu0 %v348
      %412 = vmatpush.msra.mxu0 %v346
      %413 = vmatpush.msra.mxu0 %v344
      %414 = vmatpush.msra.mxu0 %v342
      %415 = vmatpush.msra.mxu0 %v340
      %416 = vmatpush.msra.mxu0 %v338
      %417 = vmatpush.msra.mxu0 %v336
      %418 = vmatpush.msra.mxu0 %v334
      %419 = vmatpush.msra.mxu0 %v332
      %420 = vmatmul.f32.gmra.mxu0 %v289
      %v421 = vpop.f32.mrf.mxu0
      %v422 = vadd.f32 0.0, %v421
      %423 = vmatmul.f32.gmra.mxu0 %v290
      %v424 = vpop.f32.mrf.mxu0
      %v425 = vadd.f32 0.0, %v424
      %426 = vmatmul.f32.gmra.mxu0 %v291
      %v427 = vpop.f32.mrf.mxu0
      %v428 = vadd.f32 0.0, %v427
      %429 = vmatmul.f32.gmra.mxu0 %v292
      %v430 = vpop.f32.mrf.mxu0
      %v431 = vadd.f32 0.0, %v430
      %432 = vmatmul.f32.gmra.mxu0 %v293
      %v433 = vpop.f32.mrf.mxu0
      %v434 = vadd.f32 0.0, %v433
      %435 = vmatmul.f32.gmra.mxu0 %v294
      %v436 = vpop.f32.mrf.mxu0
      %v437 = vadd.f32 0.0, %v436
      %438 = vmatmul.f32.gmra.mxu0 %v295
      %v439 = vpop.f32.mrf.mxu0
      %v440 = vadd.f32 0.0, %v439
      %441 = vmatmul.f32.gmra.mxu0 %v296
      %v442 = vpop.f32.mrf.mxu0
      %v443 = vadd.f32 0.0, %v442
      %444 = vdwg.mxu0
      %445 = vmatpush.msra.mxu0 %v328
      %446 = vmatpush.msra.mxu0 %v326
      %447 = vmatpush.msra.mxu0 %v324
      %448 = vmatpush.msra.mxu0 %v322
      %449 = vmatpush.msra.mxu0 %v320
      %450 = vmatpush.msra.mxu0 %v318
      %451 = vmatpush.msra.mxu0 %v316
      %452 = vmatpush.msra.mxu0 %v314
      %453 = vmatpush.msra.mxu0 %v312
      %454 = vmatpush.msra.mxu0 %v310
      %455 = vmatpush.msra.mxu0 %v308
      %456 = vmatpush.msra.mxu0 %v306
      %457 = vmatpush.msra.mxu0 %v304
      %458 = vmatpush.msra.mxu0 %v302
      %459 = vmatpush.msra.mxu0 %v300
      %460 = vmatpush.msra.mxu0 %v298
      %461 = vmatmul.f32.gmra.mxu0 %v288
      %v462 = vpop.f32.mrf.mxu0
      %v463 = vadd.f32 %v381, %v462
      %464 = vmatmul.f32.gmra.mxu0 %v289
      %v465 = vpop.f32.mrf.mxu0
      %v466 = vadd.f32 %v384, %v465
      %467 = vmatmul.f32.gmra.mxu0 %v290
      %v468 = vpop.f32.mrf.mxu0
      %v469 = vadd.f32 %v387, %v468
      %470 = vmatmul.f32.gmra.mxu0 %v291
      %v471 = vpop.f32.mrf.mxu0
      %v472 = vadd.f32 %v390, %v471
      %473 = vmatmul.f32.gmra.mxu0 %v292
      %v474 = vpop.f32.mrf.mxu0
      %v475 = vadd.f32 %v393, %v474
      %476 = vmatmul.f32.gmra.mxu0 %v293
      %v477 = vpop.f32.mrf.mxu0
      %v478 = vadd.f32 %v396, %v477
      %479 = vmatmul.f32.gmra.mxu0 %v294
      %v480 = vpop.f32.mrf.mxu0
      %v481 = vadd.f32 %v399, %v480
      %482 = vmatmul.f32.gmra.mxu0 %v295
      %v483 = vpop.f32.mrf.mxu0
      %v484 = vadd.f32 %v402, %v483
      %485 = vdwg.mxu0
      %486 = vmatpush.msra.mxu0 %v329
      %487 = vmatpush.msra.mxu0 %v327
      %488 = vmatpush.msra.mxu0 %v325
      %489 = vmatpush.msra.mxu0 %v323
      %490 = vmatpush.msra.mxu0 %v321
      %491 = vmatpush.msra.mxu0 %v319
      %492 = vmatpush.msra.mxu0 %v317
      %493 = vmatpush.msra.mxu0 %v315
      %494 = vmatpush.msra.mxu0 %v313
      %495 = vmatpush.msra.mxu0 %v311
      %496 = vmatpush.msra.mxu0 %v309
      %497 = vmatpush.msra.mxu0 %v307
      %498 = vmatpush.msra.mxu0 %v305
      %499 = vmatpush.msra.mxu0 %v303
      %500 = vmatpush.msra.mxu0 %v301
      %501 = vmatpush.msra.mxu0 %v299
      %502 = vmatmul.f32.gmra.mxu0 %v288
      %v503 = vpop.f32.mrf.mxu0
      %v504 = vadd.f32 %v422, %v503
      %505 = vmatmul.f32.gmra.mxu0 %v289
      %v506 = vpop.f32.mrf.mxu0
      %v507 = vadd.f32 %v425, %v506
      %508 = vmatmul.f32.gmra.mxu0 %v290
      %v509 = vpop.f32.mrf.mxu0
      %v510 = vadd.f32 %v428, %v509
      %511 = vmatmul.f32.gmra.mxu0 %v291
      %v512 = vpop.f32.mrf.mxu0
      %v513 = vadd.f32 %v431, %v512
      %514 = vmatmul.f32.gmra.mxu0 %v292
      %v515 = vpop.f32.mrf.mxu0
      %v516 = vadd.f32 %v434, %v515
      %517 = vmatmul.f32.gmra.mxu0 %v293
      %v518 = vpop.f32.mrf.mxu0
      %v519 = vadd.f32 %v437, %v518
      %520 = vmatmul.f32.gmra.mxu0 %v294
      %v521 = vpop.f32.mrf.mxu0
      %v522 = vadd.f32 %v440, %v521
      %523 = vmatmul.f32.gmra.mxu0 %v295
      %v524 = vpop.f32.mrf.mxu0
      %v525 = vadd.f32 %v443, %v524
      %526 = vdwg.mxu0
      %s527 = scalar_lea.vmem %s1, 1536
      %v528 = vld [vmem:[%s527] sm:$0xff]
      %v529 = vld [vmem:[%s527 + $0x8] sm:$0xff]
      %v530 = vld [vmem:[%s527 + $0x10] sm:$0xff]
      %v531 = vld [vmem:[%s527 + $0x18] sm:$0xff]
      %v532 = vld [vmem:[%s527 + $0x20] sm:$0xff]
      %v533 = vld [vmem:[%s527 + $0x28] sm:$0xff]
      %v534 = vld [vmem:[%s527 + $0x30] sm:$0xff]
      %v535 = vld [vmem:[%s527 + $0x38] sm:$0xff]
      %v536 = vld [vmem:[%s527 + $0x40] sm:$0xff]
      %v537 = vld [vmem:[%s527 + $0x48] sm:$0xff]
      %v538 = vld [vmem:[%s527 + $0x50] sm:$0xff]
      %v539 = vld [vmem:[%s527 + $0x58] sm:$0xff]
      %v540 = vld [vmem:[%s527 + $0x60] sm:$0xff]
      %v541 = vld [vmem:[%s527 + $0x68] sm:$0xff]
      %v542 = vld [vmem:[%s527 + $0x70] sm:$0xff]
      %v543 = vld [vmem:[%s527 + $0x78] sm:$0xff]
      %v544 = vld [vmem:[%s527 + $0x80] sm:$0xff]
      %v545 = vld [vmem:[%s527 + $0x88] sm:$0xff]
      %v546 = vld [vmem:[%s527 + $0x90] sm:$0xff]
      %v547 = vld [vmem:[%s527 + $0x98] sm:$0xff]
      %v548 = vld [vmem:[%s527 + $0xa0] sm:$0xff]
      %v549 = vld [vmem:[%s527 + $0xa8] sm:$0xff]
      %v550 = vld [vmem:[%s527 + $0xb0] sm:$0xff]
      %v551 = vld [vmem:[%s527 + $0xb8] sm:$0xff]
      %v552 = vld [vmem:[%s527 + $0xc0] sm:$0xff]
      %v553 = vld [vmem:[%s527 + $0xc8] sm:$0xff]
      %v554 = vld [vmem:[%s527 + $0xd0] sm:$0xff]
      %v555 = vld [vmem:[%s527 + $0xd8] sm:$0xff]
      %v556 = vld [vmem:[%s527 + $0xe0] sm:$0xff]
      %v557 = vld [vmem:[%s527 + $0xe8] sm:$0xff]
      %v558 = vld [vmem:[%s527 + $0xf0] sm:$0xff]
      %v559 = vld [vmem:[%s527 + $0xf8] sm:$0xff]
      %560 = vmatpush.msra.mxu0 %v558
      %561 = vmatpush.msra.mxu0 %v556
      %562 = vmatpush.msra.mxu0 %v554
      %563 = vmatpush.msra.mxu0 %v552
      %564 = vmatpush.msra.mxu0 %v550
      %565 = vmatpush.msra.mxu0 %v548
      %566 = vmatpush.msra.mxu0 %v546
      %567 = vmatpush.msra.mxu0 %v544
      %568 = vmatpush.msra.mxu0 %v542
      %569 = vmatpush.msra.mxu0 %v540
      %570 = vmatpush.msra.mxu0 %v538
      %571 = vmatpush.msra.mxu0 %v536
      %572 = vmatpush.msra.mxu0 %v534
      %573 = vmatpush.msra.mxu0 %v532
      %574 = vmatpush.msra.mxu0 %v530
      %575 = vmatpush.msra.mxu0 %v528
      %576 = vmatmul.f32.gmra.mxu0 %v290
      %v577 = vpop.f32.mrf.mxu0
      %v578 = vadd.f32 0.0, %v577
      %579 = vmatmul.f32.gmra.mxu0 %v291
      %v580 = vpop.f32.mrf.mxu0
      %v581 = vadd.f32 0.0, %v580
      %582 = vmatmul.f32.gmra.mxu0 %v292
      %v583 = vpop.f32.mrf.mxu0
      %v584 = vadd.f32 0.0, %v583
      %585 = vmatmul.f32.gmra.mxu0 %v293
      %v586 = vpop.f32.mrf.mxu0
      %v587 = vadd.f32 0.0, %v586
      %588 = vmatmul.f32.gmra.mxu0 %v294
      %v589 = vpop.f32.mrf.mxu0
      %v590 = vadd.f32 0.0, %v589
      %591 = vmatmul.f32.gmra.mxu0 %v295
      %v592 = vpop.f32.mrf.mxu0
      %v593 = vadd.f32 0.0, %v592
      %594 = vmatmul.f32.gmra.mxu0 %v296
      %v595 = vpop.f32.mrf.mxu0
      %v596 = vadd.f32 0.0, %v595
      %597 = vmatmul.f32.gmra.mxu0 %v297
      %v598 = vpop.f32.mrf.mxu0
      %v599 = vadd.f32 0.0, %v598
      %600 = vdwg.mxu0
      %601 = vmatpush.msra.mxu0 %v559
      %602 = vmatpush.msra.mxu0 %v557
      %603 = vmatpush.msra.mxu0 %v555
      %604 = vmatpush.msra.mxu0 %v553
      %605 = vmatpush.msra.mxu0 %v551
      %606 = vmatpush.msra.mxu0 %v549
      %607 = vmatpush.msra.mxu0 %v547
      %608 = vmatpush.msra.mxu0 %v545
      %609 = vmatpush.msra.mxu0 %v543
      %610 = vmatpush.msra.mxu0 %v541
      %611 = vmatpush.msra.mxu0 %v539
      %612 = vmatpush.msra.mxu0 %v537
      %613 = vmatpush.msra.mxu0 %v535
      %614 = vmatpush.msra.mxu0 %v533
      %615 = vmatpush.msra.mxu0 %v531
      %616 = vmatpush.msra.mxu0 %v529
      %617 = vmatmul.f32.gmra.mxu0 %v290
      %v618 = vpop.f32.mrf.mxu0
      %v619 = vadd.f32 0.0, %v618
      %620 = vmatmul.f32.gmra.mxu0 %v291
      %v621 = vpop.f32.mrf.mxu0
      %v622 = vadd.f32 0.0, %v621
      %623 = vmatmul.f32.gmra.mxu0 %v292
      %v624 = vpop.f32.mrf.mxu0
      %v625 = vadd.f32 0.0, %v624
      %626 = vmatmul.f32.gmra.mxu0 %v293
      %v627 = vpop.f32.mrf.mxu0
      %v628 = vadd.f32 0.0, %v627
      %629 = vmatmul.f32.gmra.mxu0 %v294
      %v630 = vpop.f32.mrf.mxu0
      %v631 = vadd.f32 0.0, %v630
      %632 = vmatmul.f32.gmra.mxu0 %v295
      %v633 = vpop.f32.mrf.mxu0
      %v634 = vadd.f32 0.0, %v633
      %635 = vmatmul.f32.gmra.mxu0 %v296
      %v636 = vpop.f32.mrf.mxu0
      %v637 = vadd.f32 0.0, %v636
      %638 = vmatmul.f32.gmra.mxu0 %v297
      %v639 = vpop.f32.mrf.mxu0
      %v640 = vadd.f32 0.0, %v639
      %641 = vdwg.mxu0
      %v642 = vadd.f32 %v463, %v578
      %v643 = vadd.f32 %v504, %v619
      %v644 = vadd.f32 %v466, %v581
      %v645 = vadd.f32 %v507, %v622
      %v646 = vadd.f32 %v469, %v584
      %v647 = vadd.f32 %v510, %v625
      %v648 = vadd.f32 %v472, %v587
      %v649 = vadd.f32 %v513, %v628
      %v650 = vadd.f32 %v475, %v590
      %v651 = vadd.f32 %v516, %v631
      %v652 = vadd.f32 %v478, %v593
      %v653 = vadd.f32 %v519, %v634
      %v654 = vadd.f32 %v481, %v596
      %v655 = vadd.f32 %v522, %v637
      %v656 = vadd.f32 %v484, %v599
      %v657 = vadd.f32 %v525, %v640
      %v658 = vld [vmem:[%s202 + $0x1] sm:$0xff]
      %v659 = vld [vmem:[%s202 + $0x11] sm:$0xff]
      %v660 = vld [vmem:[%s202 + $0x21] sm:$0xff]
      %v661 = vld [vmem:[%s202 + $0x31] sm:$0xff]
      %v662 = vld [vmem:[%s202 + $0x41] sm:$0xff]
      %v663 = vld [vmem:[%s202 + $0x51] sm:$0xff]
      %v664 = vld [vmem:[%s202 + $0x61] sm:$0xff]
      %v665 = vld [vmem:[%s202 + $0x71] sm:$0xff]
      %v666 = vld [vmem:[%s202 + $0x81] sm:$0xff]
      %v667 = vld [vmem:[%s202 + $0x91] sm:$0xff]
      %s668 = scalar_lea.vmem %s1, 256
      %v669 = vld [vmem:[%s668] sm:$0xff]
      %v670 = vld [vmem:[%s668 + $0x8] sm:$0xff]
      %v671 = vld [vmem:[%s668 + $0x10] sm:$0xff]
      %v672 = vld [vmem:[%s668 + $0x18] sm:$0xff]
      %v673 = vld [vmem:[%s668 + $0x20] sm:$0xff]
      %v674 = vld [vmem:[%s668 + $0x28] sm:$0xff]
      %v675 = vld [vmem:[%s668 + $0x30] sm:$0xff]
      %v676 = vld [vmem:[%s668 + $0x38] sm:$0xff]
      %v677 = vld [vmem:[%s668 + $0x40] sm:$0xff]
      %v678 = vld [vmem:[%s668 + $0x48] sm:$0xff]
      %v679 = vld [vmem:[%s668 + $0x50] sm:$0xff]
      %v680 = vld [vmem:[%s668 + $0x58] sm:$0xff]
      %v681 = vld [vmem:[%s668 + $0x60] sm:$0xff]
      %v682 = vld [vmem:[%s668 + $0x68] sm:$0xff]
      %v683 = vld [vmem:[%s668 + $0x70] sm:$0xff]
      %v684 = vld [vmem:[%s668 + $0x78] sm:$0xff]
      %v685 = vld [vmem:[%s668 + $0x80] sm:$0xff]
      %v686 = vld [vmem:[%s668 + $0x88] sm:$0xff]
      %v687 = vld [vmem:[%s668 + $0x90] sm:$0xff]
      %v688 = vld [vmem:[%s668 + $0x98] sm:$0xff]
      %v689 = vld [vmem:[%s668 + $0xa0] sm:$0xff]
      %v690 = vld [vmem:[%s668 + $0xa8] sm:$0xff]
      %v691 = vld [vmem:[%s668 + $0xb0] sm:$0xff]
      %v692 = vld [vmem:[%s668 + $0xb8] sm:$0xff]
      %v693 = vld [vmem:[%s668 + $0xc0] sm:$0xff]
      %v694 = vld [vmem:[%s668 + $0xc8] sm:$0xff]
      %v695 = vld [vmem:[%s668 + $0xd0] sm:$0xff]
      %v696 = vld [vmem:[%s668 + $0xd8] sm:$0xff]
      %v697 = vld [vmem:[%s668 + $0xe0] sm:$0xff]
      %v698 = vld [vmem:[%s668 + $0xe8] sm:$0xff]
      %v699 = vld [vmem:[%s668 + $0xf0] sm:$0xff]
      %v700 = vld [vmem:[%s668 + $0xf8] sm:$0xff]
      %701 = vmatpush.msra.mxu0 %v699
      %702 = vmatpush.msra.mxu0 %v697
      %703 = vmatpush.msra.mxu0 %v695
      %704 = vmatpush.msra.mxu0 %v693
      %705 = vmatpush.msra.mxu0 %v691
      %706 = vmatpush.msra.mxu0 %v689
      %707 = vmatpush.msra.mxu0 %v687
      %708 = vmatpush.msra.mxu0 %v685
      %709 = vmatpush.msra.mxu0 %v683
      %710 = vmatpush.msra.mxu0 %v681
      %711 = vmatpush.msra.mxu0 %v679
      %712 = vmatpush.msra.mxu0 %v677
      %713 = vmatpush.msra.mxu0 %v675
      %714 = vmatpush.msra.mxu0 %v673
      %715 = vmatpush.msra.mxu0 %v671
      %716 = vmatpush.msra.mxu0 %v669
      %717 = vmatmul.f32.gmra.mxu0 %v658
      %v718 = vpop.f32.mrf.mxu0
      %v719 = vadd.f32 0.0, %v718
      %720 = vmatmul.f32.gmra.mxu0 %v659
      %v721 = vpop.f32.mrf.mxu0
      %v722 = vadd.f32 0.0, %v721
      %723 = vmatmul.f32.gmra.mxu0 %v660
      %v724 = vpop.f32.mrf.mxu0
      %v725 = vadd.f32 0.0, %v724
      %726 = vmatmul.f32.gmra.mxu0 %v661
      %v727 = vpop.f32.mrf.mxu0
      %v728 = vadd.f32 0.0, %v727
      %729 = vmatmul.f32.gmra.mxu0 %v662
      %v730 = vpop.f32.mrf.mxu0
      %v731 = vadd.f32 0.0, %v730
      %732 = vmatmul.f32.gmra.mxu0 %v663
      %v733 = vpop.f32.mrf.mxu0
      %v734 = vadd.f32 0.0, %v733
      %735 = vmatmul.f32.gmra.mxu0 %v664
      %v736 = vpop.f32.mrf.mxu0
      %v737 = vadd.f32 0.0, %v736
      %738 = vmatmul.f32.gmra.mxu0 %v665
      %v739 = vpop.f32.mrf.mxu0
      %v740 = vadd.f32 0.0, %v739
      %741 = vdwg.mxu0
      %742 = vmatpush.msra.mxu0 %v700
      %743 = vmatpush.msra.mxu0 %v698
      %744 = vmatpush.msra.mxu0 %v696
      %745 = vmatpush.msra.mxu0 %v694
      %746 = vmatpush.msra.mxu0 %v692
      %747 = vmatpush.msra.mxu0 %v690
      %748 = vmatpush.msra.mxu0 %v688
      %749 = vmatpush.msra.mxu0 %v686
      %750 = vmatpush.msra.mxu0 %v684
      %751 = vmatpush.msra.mxu0 %v682
      %752 = vmatpush.msra.mxu0 %v680
      %753 = vmatpush.msra.mxu0 %v678
      %754 = vmatpush.msra.mxu0 %v676
      %755 = vmatpush.msra.mxu0 %v674
      %756 = vmatpush.msra.mxu0 %v672
      %757 = vmatpush.msra.mxu0 %v670
      %758 = vmatmul.f32.gmra.mxu0 %v658
      %v759 = vpop.f32.mrf.mxu0
      %v760 = vadd.f32 0.0, %v759
      %761 = vmatmul.f32.gmra.mxu0 %v659
      %v762 = vpop.f32.mrf.mxu0
      %v763 = vadd.f32 0.0, %v762
      %764 = vmatmul.f32.gmra.mxu0 %v660
      %v765 = vpop.f32.mrf.mxu0
      %v766 = vadd.f32 0.0, %v765
      %767 = vmatmul.f32.gmra.mxu0 %v661
      %v768 = vpop.f32.mrf.mxu0
      %v769 = vadd.f32 0.0, %v768
      %770 = vmatmul.f32.gmra.mxu0 %v662
      %v771 = vpop.f32.mrf.mxu0
      %v772 = vadd.f32 0.0, %v771
      %773 = vmatmul.f32.gmra.mxu0 %v663
      %v774 = vpop.f32.mrf.mxu0
      %v775 = vadd.f32 0.0, %v774
      %776 = vmatmul.f32.gmra.mxu0 %v664
      %v777 = vpop.f32.mrf.mxu0
      %v778 = vadd.f32 0.0, %v777
      %779 = vmatmul.f32.gmra.mxu0 %v665
      %v780 = vpop.f32.mrf.mxu0
      %v781 = vadd.f32 0.0, %v780
      %782 = vdwg.mxu0
      %v783 = vadd.f32 %v642, %v719
      %v784 = vadd.f32 %v643, %v760
      %v785 = vadd.f32 %v644, %v722
      %v786 = vadd.f32 %v645, %v763
      %v787 = vadd.f32 %v646, %v725
      %v788 = vadd.f32 %v647, %v766
      %v789 = vadd.f32 %v648, %v728
      %v790 = vadd.f32 %v649, %v769
      %v791 = vadd.f32 %v650, %v731
      %v792 = vadd.f32 %v651, %v772
      %v793 = vadd.f32 %v652, %v734
      %v794 = vadd.f32 %v653, %v775
      %v795 = vadd.f32 %v654, %v737
      %v796 = vadd.f32 %v655, %v778
      %v797 = vadd.f32 %v656, %v740
      %v798 = vadd.f32 %v657, %v781
      %s799 = scalar_lea.vmem %s1, 1024
      %v800 = vld [vmem:[%s799] sm:$0xff]
      %v801 = vld [vmem:[%s799 + $0x8] sm:$0xff]
      %v802 = vld [vmem:[%s799 + $0x10] sm:$0xff]
      %v803 = vld [vmem:[%s799 + $0x18] sm:$0xff]
      %v804 = vld [vmem:[%s799 + $0x20] sm:$0xff]
      %v805 = vld [vmem:[%s799 + $0x28] sm:$0xff]
      %v806 = vld [vmem:[%s799 + $0x30] sm:$0xff]
      %v807 = vld [vmem:[%s799 + $0x38] sm:$0xff]
      %v808 = vld [vmem:[%s799 + $0x40] sm:$0xff]
      %v809 = vld [vmem:[%s799 + $0x48] sm:$0xff]
      %v810 = vld [vmem:[%s799 + $0x50] sm:$0xff]
      %v811 = vld [vmem:[%s799 + $0x58] sm:$0xff]
      %v812 = vld [vmem:[%s799 + $0x60] sm:$0xff]
      %v813 = vld [vmem:[%s799 + $0x68] sm:$0xff]
      %v814 = vld [vmem:[%s799 + $0x70] sm:$0xff]
      %v815 = vld [vmem:[%s799 + $0x78] sm:$0xff]
      %v816 = vld [vmem:[%s799 + $0x80] sm:$0xff]
      %v817 = vld [vmem:[%s799 + $0x88] sm:$0xff]
      %v818 = vld [vmem:[%s799 + $0x90] sm:$0xff]
      %v819 = vld [vmem:[%s799 + $0x98] sm:$0xff]
      %v820 = vld [vmem:[%s799 + $0xa0] sm:$0xff]
      %v821 = vld [vmem:[%s799 + $0xa8] sm:$0xff]
      %v822 = vld [vmem:[%s799 + $0xb0] sm:$0xff]
      %v823 = vld [vmem:[%s799 + $0xb8] sm:$0xff]
      %v824 = vld [vmem:[%s799 + $0xc0] sm:$0xff]
      %v825 = vld [vmem:[%s799 + $0xc8] sm:$0xff]
      %v826 = vld [vmem:[%s799 + $0xd0] sm:$0xff]
      %v827 = vld [vmem:[%s799 + $0xd8] sm:$0xff]
      %v828 = vld [vmem:[%s799 + $0xe0] sm:$0xff]
      %v829 = vld [vmem:[%s799 + $0xe8] sm:$0xff]
      %v830 = vld [vmem:[%s799 + $0xf0] sm:$0xff]
      %v831 = vld [vmem:[%s799 + $0xf8] sm:$0xff]
      %832 = vmatpush.msra.mxu0 %v830
      %833 = vmatpush.msra.mxu0 %v828
      %834 = vmatpush.msra.mxu0 %v826
      %835 = vmatpush.msra.mxu0 %v824
      %836 = vmatpush.msra.mxu0 %v822
      %837 = vmatpush.msra.mxu0 %v820
      %838 = vmatpush.msra.mxu0 %v818
      %839 = vmatpush.msra.mxu0 %v816
      %840 = vmatpush.msra.mxu0 %v814
      %841 = vmatpush.msra.mxu0 %v812
      %842 = vmatpush.msra.mxu0 %v810
      %843 = vmatpush.msra.mxu0 %v808
      %844 = vmatpush.msra.mxu0 %v806
      %845 = vmatpush.msra.mxu0 %v804
      %846 = vmatpush.msra.mxu0 %v802
      %847 = vmatpush.msra.mxu0 %v800
      %848 = vmatmul.f32.gmra.mxu0 %v659
      %v849 = vpop.f32.mrf.mxu0
      %v850 = vadd.f32 0.0, %v849
      %851 = vmatmul.f32.gmra.mxu0 %v660
      %v852 = vpop.f32.mrf.mxu0
      %v853 = vadd.f32 0.0, %v852
      %854 = vmatmul.f32.gmra.mxu0 %v661
      %v855 = vpop.f32.mrf.mxu0
      %v856 = vadd.f32 0.0, %v855
      %857 = vmatmul.f32.gmra.mxu0 %v662
      %v858 = vpop.f32.mrf.mxu0
      %v859 = vadd.f32 0.0, %v858
      %860 = vmatmul.f32.gmra.mxu0 %v663
      %v861 = vpop.f32.mrf.mxu0
      %v862 = vadd.f32 0.0, %v861
      %863 = vmatmul.f32.gmra.mxu0 %v664
      %v864 = vpop.f32.mrf.mxu0
      %v865 = vadd.f32 0.0, %v864
      %866 = vmatmul.f32.gmra.mxu0 %v665
      %v867 = vpop.f32.mrf.mxu0
      %v868 = vadd.f32 0.0, %v867
      %869 = vmatmul.f32.gmra.mxu0 %v666
      %v870 = vpop.f32.mrf.mxu0
      %v871 = vadd.f32 0.0, %v870
      %872 = vdwg.mxu0
      %873 = vmatpush.msra.mxu0 %v831
      %874 = vmatpush.msra.mxu0 %v829
      %875 = vmatpush.msra.mxu0 %v827
      %876 = vmatpush.msra.mxu0 %v825
      %877 = vmatpush.msra.mxu0 %v823
      %878 = vmatpush.msra.mxu0 %v821
      %879 = vmatpush.msra.mxu0 %v819
      %880 = vmatpush.msra.mxu0 %v817
      %881 = vmatpush.msra.mxu0 %v815
      %882 = vmatpush.msra.mxu0 %v813
      %883 = vmatpush.msra.mxu0 %v811
      %884 = vmatpush.msra.mxu0 %v809
      %885 = vmatpush.msra.mxu0 %v807
      %886 = vmatpush.msra.mxu0 %v805
      %887 = vmatpush.msra.mxu0 %v803
      %888 = vmatpush.msra.mxu0 %v801
      %889 = vmatmul.f32.gmra.mxu0 %v659
      %v890 = vpop.f32.mrf.mxu0
      %v891 = vadd.f32 0.0, %v890
      %892 = vmatmul.f32.gmra.mxu0 %v660
      %v893 = vpop.f32.mrf.mxu0
      %v894 = vadd.f32 0.0, %v893
      %895 = vmatmul.f32.gmra.mxu0 %v661
      %v896 = vpop.f32.mrf.mxu0
      %v897 = vadd.f32 0.0, %v896
      %898 = vmatmul.f32.gmra.mxu0 %v662
      %v899 = vpop.f32.mrf.mxu0
      %v900 = vadd.f32 0.0, %v899
      %901 = vmatmul.f32.gmra.mxu0 %v663
      %v902 = vpop.f32.mrf.mxu0
      %v903 = vadd.f32 0.0, %v902
      %904 = vmatmul.f32.gmra.mxu0 %v664
      %v905 = vpop.f32.mrf.mxu0
      %v906 = vadd.f32 0.0, %v905
      %907 = vmatmul.f32.gmra.mxu0 %v665
      %v908 = vpop.f32.mrf.mxu0
      %v909 = vadd.f32 0.0, %v908
      %910 = vmatmul.f32.gmra.mxu0 %v666
      %v911 = vpop.f32.mrf.mxu0
      %v912 = vadd.f32 0.0, %v911
      %913 = vdwg.mxu0
      %v914 = vadd.f32 %v783, %v850
      %v915 = vadd.f32 %v784, %v891
      %v916 = vadd.f32 %v785, %v853
      %v917 = vadd.f32 %v786, %v894
      %v918 = vadd.f32 %v787, %v856
      %v919 = vadd.f32 %v788, %v897
      %v920 = vadd.f32 %v789, %v859
      %v921 = vadd.f32 %v790, %v900
      %v922 = vadd.f32 %v791, %v862
      %v923 = vadd.f32 %v792, %v903
      %v924 = vadd.f32 %v793, %v865
      %v925 = vadd.f32 %v794, %v906
      %v926 = vadd.f32 %v795, %v868
      %v927 = vadd.f32 %v796, %v909
      %v928 = vadd.f32 %v797, %v871
      %v929 = vadd.f32 %v798, %v912
      %s930 = scalar_lea.vmem %s1, 1792
      %v931 = vld [vmem:[%s930] sm:$0xff]
      %v932 = vld [vmem:[%s930 + $0x8] sm:$0xff]
      %v933 = vld [vmem:[%s930 + $0x10] sm:$0xff]
      %v934 = vld [vmem:[%s930 + $0x18] sm:$0xff]
      %v935 = vld [vmem:[%s930 + $0x20] sm:$0xff]
      %v936 = vld [vmem:[%s930 + $0x28] sm:$0xff]
      %v937 = vld [vmem:[%s930 + $0x30] sm:$0xff]
      %v938 = vld [vmem:[%s930 + $0x38] sm:$0xff]
      %v939 = vld [vmem:[%s930 + $0x40] sm:$0xff]
      %v940 = vld [vmem:[%s930 + $0x48] sm:$0xff]
      %v941 = vld [vmem:[%s930 + $0x50] sm:$0xff]
      %v942 = vld [vmem:[%s930 + $0x58] sm:$0xff]
      %v943 = vld [vmem:[%s930 + $0x60] sm:$0xff]
      %v944 = vld [vmem:[%s930 + $0x68] sm:$0xff]
      %v945 = vld [vmem:[%s930 + $0x70] sm:$0xff]
      %v946 = vld [vmem:[%s930 + $0x78] sm:$0xff]
      %v947 = vld [vmem:[%s930 + $0x80] sm:$0xff]
      %v948 = vld [vmem:[%s930 + $0x88] sm:$0xff]
      %v949 = vld [vmem:[%s930 + $0x90] sm:$0xff]
      %v950 = vld [vmem:[%s930 + $0x98] sm:$0xff]
      %v951 = vld [vmem:[%s930 + $0xa0] sm:$0xff]
      %v952 = vld [vmem:[%s930 + $0xa8] sm:$0xff]
      %v953 = vld [vmem:[%s930 + $0xb0] sm:$0xff]
      %v954 = vld [vmem:[%s930 + $0xb8] sm:$0xff]
      %v955 = vld [vmem:[%s930 + $0xc0] sm:$0xff]
      %v956 = vld [vmem:[%s930 + $0xc8] sm:$0xff]
      %v957 = vld [vmem:[%s930 + $0xd0] sm:$0xff]
      %v958 = vld [vmem:[%s930 + $0xd8] sm:$0xff]
      %v959 = vld [vmem:[%s930 + $0xe0] sm:$0xff]
      %v960 = vld [vmem:[%s930 + $0xe8] sm:$0xff]
      %v961 = vld [vmem:[%s930 + $0xf0] sm:$0xff]
      %v962 = vld [vmem:[%s930 + $0xf8] sm:$0xff]
      %963 = vmatpush.msra.mxu0 %v961
      %964 = vmatpush.msra.mxu0 %v959
      %965 = vmatpush.msra.mxu0 %v957
      %966 = vmatpush.msra.mxu0 %v955
      %967 = vmatpush.msra.mxu0 %v953
      %968 = vmatpush.msra.mxu0 %v951
      %969 = vmatpush.msra.mxu0 %v949
      %970 = vmatpush.msra.mxu0 %v947
      %971 = vmatpush.msra.mxu0 %v945
      %972 = vmatpush.msra.mxu0 %v943
      %973 = vmatpush.msra.mxu0 %v941
      %974 = vmatpush.msra.mxu0 %v939
      %975 = vmatpush.msra.mxu0 %v937
      %976 = vmatpush.msra.mxu0 %v935
      %977 = vmatpush.msra.mxu0 %v933
      %978 = vmatpush.msra.mxu0 %v931
      %979 = vmatmul.f32.gmra.mxu0 %v660
      %v980 = vpop.f32.mrf.mxu0
      %v981 = vadd.f32 0.0, %v980
      %982 = vmatmul.f32.gmra.mxu0 %v661
      %v983 = vpop.f32.mrf.mxu0
      %v984 = vadd.f32 0.0, %v983
      %985 = vmatmul.f32.gmra.mxu0 %v662
      %v986 = vpop.f32.mrf.mxu0
      %v987 = vadd.f32 0.0, %v986
      %988 = vmatmul.f32.gmra.mxu0 %v663
      %v989 = vpop.f32.mrf.mxu0
      %v990 = vadd.f32 0.0, %v989
      %991 = vmatmul.f32.gmra.mxu0 %v664
      %v992 = vpop.f32.mrf.mxu0
      %v993 = vadd.f32 0.0, %v992
      %994 = vmatmul.f32.gmra.mxu0 %v665
      %v995 = vpop.f32.mrf.mxu0
      %v996 = vadd.f32 0.0, %v995
      %997 = vmatmul.f32.gmra.mxu0 %v666
      %v998 = vpop.f32.mrf.mxu0
      %v999 = vadd.f32 0.0, %v998
      %1000 = vmatmul.f32.gmra.mxu0 %v667
      %v1001 = vpop.f32.mrf.mxu0
      %v1002 = vadd.f32 0.0, %v1001
      %1003 = vdwg.mxu0
      %1004 = vmatpush.msra.mxu0 %v962
      %1005 = vmatpush.msra.mxu0 %v960
      %1006 = vmatpush.msra.mxu0 %v958
      %1007 = vmatpush.msra.mxu0 %v956
      %1008 = vmatpush.msra.mxu0 %v954
      %1009 = vmatpush.msra.mxu0 %v952
      %1010 = vmatpush.msra.mxu0 %v950
      %1011 = vmatpush.msra.mxu0 %v948
      %1012 = vmatpush.msra.mxu0 %v946
      %1013 = vmatpush.msra.mxu0 %v944
      %1014 = vmatpush.msra.mxu0 %v942
      %1015 = vmatpush.msra.mxu0 %v940
      %1016 = vmatpush.msra.mxu0 %v938
      %1017 = vmatpush.msra.mxu0 %v936
      %1018 = vmatpush.msra.mxu0 %v934
      %1019 = vmatpush.msra.mxu0 %v932
      %1020 = vmatmul.f32.gmra.mxu0 %v660
      %v1021 = vpop.f32.mrf.mxu0
      %v1022 = vadd.f32 0.0, %v1021
      %1023 = vmatmul.f32.gmra.mxu0 %v661
      %v1024 = vpop.f32.mrf.mxu0
      %v1025 = vadd.f32 0.0, %v1024
      %1026 = vmatmul.f32.gmra.mxu0 %v662
      %v1027 = vpop.f32.mrf.mxu0
      %v1028 = vadd.f32 0.0, %v1027
      %1029 = vmatmul.f32.gmra.mxu0 %v663
      %v1030 = vpop.f32.mrf.mxu0
      %v1031 = vadd.f32 0.0, %v1030
      %1032 = vmatmul.f32.gmra.mxu0 %v664
      %v1033 = vpop.f32.mrf.mxu0
      %v1034 = vadd.f32 0.0, %v1033
      %1035 = vmatmul.f32.gmra.mxu0 %v665
      %v1036 = vpop.f32.mrf.mxu0
      %v1037 = vadd.f32 0.0, %v1036
      %1038 = vmatmul.f32.gmra.mxu0 %v666
      %v1039 = vpop.f32.mrf.mxu0
      %v1040 = vadd.f32 0.0, %v1039
      %1041 = vmatmul.f32.gmra.mxu0 %v667
      %v1042 = vpop.f32.mrf.mxu0
      %v1043 = vadd.f32 0.0, %v1042
      %1044 = vdwg.mxu0
      %v1045 = vadd.f32 %v914, %v981
      %v1046 = vadd.f32 %v915, %v1022
      %v1047 = vadd.f32 %v916, %v984
      %v1048 = vadd.f32 %v917, %v1025
      %v1049 = vadd.f32 %v918, %v987
      %v1050 = vadd.f32 %v919, %v1028
      %v1051 = vadd.f32 %v920, %v990
      %v1052 = vadd.f32 %v921, %v1031
      %v1053 = vadd.f32 %v922, %v993
      %v1054 = vadd.f32 %v923, %v1034
      %v1055 = vadd.f32 %v924, %v996
      %v1056 = vadd.f32 %v925, %v1037
      %v1057 = vadd.f32 %v926, %v999
      %v1058 = vadd.f32 %v927, %v1040
      %v1059 = vadd.f32 %v928, %v1002
      %v1060 = vadd.f32 %v929, %v1043
      %v1061 = vld [vmem:[%s202 + $0x2] sm:$0xff]
      %v1062 = vld [vmem:[%s202 + $0x12] sm:$0xff]
      %v1063 = vld [vmem:[%s202 + $0x22] sm:$0xff]
      %v1064 = vld [vmem:[%s202 + $0x32] sm:$0xff]
      %v1065 = vld [vmem:[%s202 + $0x42] sm:$0xff]
      %v1066 = vld [vmem:[%s202 + $0x52] sm:$0xff]
      %v1067 = vld [vmem:[%s202 + $0x62] sm:$0xff]
      %v1068 = vld [vmem:[%s202 + $0x72] sm:$0xff]
      %v1069 = vld [vmem:[%s202 + $0x82] sm:$0xff]
      %v1070 = vld [vmem:[%s202 + $0x92] sm:$0xff]
      %s1071 = scalar_lea.vmem %s1, 512
      %v1072 = vld [vmem:[%s1071] sm:$0xff]
      %v1073 = vld [vmem:[%s1071 + $0x8] sm:$0xff]
      %v1074 = vld [vmem:[%s1071 + $0x10] sm:$0xff]
      %v1075 = vld [vmem:[%s1071 + $0x18] sm:$0xff]
      %v1076 = vld [vmem:[%s1071 + $0x20] sm:$0xff]
      %v1077 = vld [vmem:[%s1071 + $0x28] sm:$0xff]
      %v1078 = vld [vmem:[%s1071 + $0x30] sm:$0xff]
      %v1079 = vld [vmem:[%s1071 + $0x38] sm:$0xff]
      %v1080 = vld [vmem:[%s1071 + $0x40] sm:$0xff]
      %v1081 = vld [vmem:[%s1071 + $0x48] sm:$0xff]
      %v1082 = vld [vmem:[%s1071 + $0x50] sm:$0xff]
      %v1083 = vld [vmem:[%s1071 + $0x58] sm:$0xff]
      %v1084 = vld [vmem:[%s1071 + $0x60] sm:$0xff]
      %v1085 = vld [vmem:[%s1071 + $0x68] sm:$0xff]
      %v1086 = vld [vmem:[%s1071 + $0x70] sm:$0xff]
      %v1087 = vld [vmem:[%s1071 + $0x78] sm:$0xff]
      %v1088 = vld [vmem:[%s1071 + $0x80] sm:$0xff]
      %v1089 = vld [vmem:[%s1071 + $0x88] sm:$0xff]
      %v1090 = vld [vmem:[%s1071 + $0x90] sm:$0xff]
      %v1091 = vld [vmem:[%s1071 + $0x98] sm:$0xff]
      %v1092 = vld [vmem:[%s1071 + $0xa0] sm:$0xff]
      %v1093 = vld [vmem:[%s1071 + $0xa8] sm:$0xff]
      %v1094 = vld [vmem:[%s1071 + $0xb0] sm:$0xff]
      %v1095 = vld [vmem:[%s1071 + $0xb8] sm:$0xff]
      %v1096 = vld [vmem:[%s1071 + $0xc0] sm:$0xff]
      %v1097 = vld [vmem:[%s1071 + $0xc8] sm:$0xff]
      %v1098 = vld [vmem:[%s1071 + $0xd0] sm:$0xff]
      %v1099 = vld [vmem:[%s1071 + $0xd8] sm:$0xff]
      %v1100 = vld [vmem:[%s1071 + $0xe0] sm:$0xff]
      %v1101 = vld [vmem:[%s1071 + $0xe8] sm:$0xff]
      %v1102 = vld [vmem:[%s1071 + $0xf0] sm:$0xff]
      %v1103 = vld [vmem:[%s1071 + $0xf8] sm:$0xff]
      %1104 = vmatpush.msra.mxu0 %v1102
      %1105 = vmatpush.msra.mxu0 %v1100
      %1106 = vmatpush.msra.mxu0 %v1098
      %1107 = vmatpush.msra.mxu0 %v1096
      %1108 = vmatpush.msra.mxu0 %v1094
      %1109 = vmatpush.msra.mxu0 %v1092
      %1110 = vmatpush.msra.mxu0 %v1090
      %1111 = vmatpush.msra.mxu0 %v1088
      %1112 = vmatpush.msra.mxu0 %v1086
      %1113 = vmatpush.msra.mxu0 %v1084
      %1114 = vmatpush.msra.mxu0 %v1082
      %1115 = vmatpush.msra.mxu0 %v1080
      %1116 = vmatpush.msra.mxu0 %v1078
      %1117 = vmatpush.msra.mxu0 %v1076
      %1118 = vmatpush.msra.mxu0 %v1074
      %1119 = vmatpush.msra.mxu0 %v1072
      %1120 = vmatmul.f32.gmra.mxu0 %v1061
      %v1121 = vpop.f32.mrf.mxu0
      %v1122 = vadd.f32 0.0, %v1121
      %1123 = vmatmul.f32.gmra.mxu0 %v1062
      %v1124 = vpop.f32.mrf.mxu0
      %v1125 = vadd.f32 0.0, %v1124
      %1126 = vmatmul.f32.gmra.mxu0 %v1063
      %v1127 = vpop.f32.mrf.mxu0
      %v1128 = vadd.f32 0.0, %v1127
      %1129 = vmatmul.f32.gmra.mxu0 %v1064
      %v1130 = vpop.f32.mrf.mxu0
      %v1131 = vadd.f32 0.0, %v1130
      %1132 = vmatmul.f32.gmra.mxu0 %v1065
      %v1133 = vpop.f32.mrf.mxu0
      %v1134 = vadd.f32 0.0, %v1133
      %1135 = vmatmul.f32.gmra.mxu0 %v1066
      %v1136 = vpop.f32.mrf.mxu0
      %v1137 = vadd.f32 0.0, %v1136
      %1138 = vmatmul.f32.gmra.mxu0 %v1067
      %v1139 = vpop.f32.mrf.mxu0
      %v1140 = vadd.f32 0.0, %v1139
      %1141 = vmatmul.f32.gmra.mxu0 %v1068
      %v1142 = vpop.f32.mrf.mxu0
      %v1143 = vadd.f32 0.0, %v1142
      %1144 = vdwg.mxu0
      %1145 = vmatpush.msra.mxu0 %v1103
      %1146 = vmatpush.msra.mxu0 %v1101
      %1147 = vmatpush.msra.mxu0 %v1099
      %1148 = vmatpush.msra.mxu0 %v1097
      %1149 = vmatpush.msra.mxu0 %v1095
      %1150 = vmatpush.msra.mxu0 %v1093
      %1151 = vmatpush.msra.mxu0 %v1091
      %1152 = vmatpush.msra.mxu0 %v1089
      %1153 = vmatpush.msra.mxu0 %v1087
      %1154 = vmatpush.msra.mxu0 %v1085
      %1155 = vmatpush.msra.mxu0 %v1083
      %1156 = vmatpush.msra.mxu0 %v1081
      %1157 = vmatpush.msra.mxu0 %v1079
      %1158 = vmatpush.msra.mxu0 %v1077
      %1159 = vmatpush.msra.mxu0 %v1075
      %1160 = vmatpush.msra.mxu0 %v1073
      %1161 = vmatmul.f32.gmra.mxu0 %v1061
      %v1162 = vpop.f32.mrf.mxu0
      %v1163 = vadd.f32 0.0, %v1162
      %1164 = vmatmul.f32.gmra.mxu0 %v1062
      %v1165 = vpop.f32.mrf.mxu0
      %v1166 = vadd.f32 0.0, %v1165
      %1167 = vmatmul.f32.gmra.mxu0 %v1063
      %v1168 = vpop.f32.mrf.mxu0
      %v1169 = vadd.f32 0.0, %v1168
      %1170 = vmatmul.f32.gmra.mxu0 %v1064
      %v1171 = vpop.f32.mrf.mxu0
      %v1172 = vadd.f32 0.0, %v1171
      %1173 = vmatmul.f32.gmra.mxu0 %v1065
      %v1174 = vpop.f32.mrf.mxu0
      %v1175 = vadd.f32 0.0, %v1174
      %1176 = vmatmul.f32.gmra.mxu0 %v1066
      %v1177 = vpop.f32.mrf.mxu0
      %v1178 = vadd.f32 0.0, %v1177
      %1179 = vmatmul.f32.gmra.mxu0 %v1067
      %v1180 = vpop.f32.mrf.mxu0
      %v1181 = vadd.f32 0.0, %v1180
      %1182 = vmatmul.f32.gmra.mxu0 %v1068
      %v1183 = vpop.f32.mrf.mxu0
      %v1184 = vadd.f32 0.0, %v1183
      %1185 = vdwg.mxu0
      %v1186 = vadd.f32 %v1045, %v1122
      %v1187 = vadd.f32 %v1046, %v1163
      %v1188 = vadd.f32 %v1047, %v1125
      %v1189 = vadd.f32 %v1048, %v1166
      %v1190 = vadd.f32 %v1049, %v1128
      %v1191 = vadd.f32 %v1050, %v1169
      %v1192 = vadd.f32 %v1051, %v1131
      %v1193 = vadd.f32 %v1052, %v1172
      %v1194 = vadd.f32 %v1053, %v1134
      %v1195 = vadd.f32 %v1054, %v1175
      %v1196 = vadd.f32 %v1055, %v1137
      %v1197 = vadd.f32 %v1056, %v1178
      %v1198 = vadd.f32 %v1057, %v1140
      %v1199 = vadd.f32 %v1058, %v1181
      %v1200 = vadd.f32 %v1059, %v1143
      %v1201 = vadd.f32 %v1060, %v1184
      %s1202 = scalar_lea.vmem %s1, 1280
      %v1203 = vld [vmem:[%s1202] sm:$0xff]
      %v1204 = vld [vmem:[%s1202 + $0x8] sm:$0xff]
      %v1205 = vld [vmem:[%s1202 + $0x10] sm:$0xff]
      %v1206 = vld [vmem:[%s1202 + $0x18] sm:$0xff]
      %v1207 = vld [vmem:[%s1202 + $0x20] sm:$0xff]
      %v1208 = vld [vmem:[%s1202 + $0x28] sm:$0xff]
      %v1209 = vld [vmem:[%s1202 + $0x30] sm:$0xff]
      %v1210 = vld [vmem:[%s1202 + $0x38] sm:$0xff]
      %v1211 = vld [vmem:[%s1202 + $0x40] sm:$0xff]
      %v1212 = vld [vmem:[%s1202 + $0x48] sm:$0xff]
      %v1213 = vld [vmem:[%s1202 + $0x50] sm:$0xff]
      %v1214 = vld [vmem:[%s1202 + $0x58] sm:$0xff]
      %v1215 = vld [vmem:[%s1202 + $0x60] sm:$0xff]
      %v1216 = vld [vmem:[%s1202 + $0x68] sm:$0xff]
      %v1217 = vld [vmem:[%s1202 + $0x70] sm:$0xff]
      %v1218 = vld [vmem:[%s1202 + $0x78] sm:$0xff]
      %v1219 = vld [vmem:[%s1202 + $0x80] sm:$0xff]
      %v1220 = vld [vmem:[%s1202 + $0x88] sm:$0xff]
      %v1221 = vld [vmem:[%s1202 + $0x90] sm:$0xff]
      %v1222 = vld [vmem:[%s1202 + $0x98] sm:$0xff]
      %v1223 = vld [vmem:[%s1202 + $0xa0] sm:$0xff]
      %v1224 = vld [vmem:[%s1202 + $0xa8] sm:$0xff]
      %v1225 = vld [vmem:[%s1202 + $0xb0] sm:$0xff]
      %v1226 = vld [vmem:[%s1202 + $0xb8] sm:$0xff]
      %v1227 = vld [vmem:[%s1202 + $0xc0] sm:$0xff]
      %v1228 = vld [vmem:[%s1202 + $0xc8] sm:$0xff]
      %v1229 = vld [vmem:[%s1202 + $0xd0] sm:$0xff]
      %v1230 = vld [vmem:[%s1202 + $0xd8] sm:$0xff]
      %v1231 = vld [vmem:[%s1202 + $0xe0] sm:$0xff]
      %v1232 = vld [vmem:[%s1202 + $0xe8] sm:$0xff]
      %v1233 = vld [vmem:[%s1202 + $0xf0] sm:$0xff]
      %v1234 = vld [vmem:[%s1202 + $0xf8] sm:$0xff]
      %1235 = vmatpush.msra.mxu0 %v1233
      %1236 = vmatpush.msra.mxu0 %v1231
      %1237 = vmatpush.msra.mxu0 %v1229
      %1238 = vmatpush.msra.mxu0 %v1227
      %1239 = vmatpush.msra.mxu0 %v1225
      %1240 = vmatpush.msra.mxu0 %v1223
      %1241 = vmatpush.msra.mxu0 %v1221
      %1242 = vmatpush.msra.mxu0 %v1219
      %1243 = vmatpush.msra.mxu0 %v1217
      %1244 = vmatpush.msra.mxu0 %v1215
      %1245 = vmatpush.msra.mxu0 %v1213
      %1246 = vmatpush.msra.mxu0 %v1211
      %1247 = vmatpush.msra.mxu0 %v1209
      %1248 = vmatpush.msra.mxu0 %v1207
      %1249 = vmatpush.msra.mxu0 %v1205
      %1250 = vmatpush.msra.mxu0 %v1203
      %1251 = vmatmul.f32.gmra.mxu0 %v1062
      %v1252 = vpop.f32.mrf.mxu0
      %v1253 = vadd.f32 0.0, %v1252
      %1254 = vmatmul.f32.gmra.mxu0 %v1063
      %v1255 = vpop.f32.mrf.mxu0
      %v1256 = vadd.f32 0.0, %v1255
      %1257 = vmatmul.f32.gmra.mxu0 %v1064
      %v1258 = vpop.f32.mrf.mxu0
      %v1259 = vadd.f32 0.0, %v1258
      %1260 = vmatmul.f32.gmra.mxu0 %v1065
      %v1261 = vpop.f32.mrf.mxu0
      %v1262 = vadd.f32 0.0, %v1261
      %1263 = vmatmul.f32.gmra.mxu0 %v1066
      %v1264 = vpop.f32.mrf.mxu0
      %v1265 = vadd.f32 0.0, %v1264
      %1266 = vmatmul.f32.gmra.mxu0 %v1067
      %v1267 = vpop.f32.mrf.mxu0
      %v1268 = vadd.f32 0.0, %v1267
      %1269 = vmatmul.f32.gmra.mxu0 %v1068
      %v1270 = vpop.f32.mrf.mxu0
      %v1271 = vadd.f32 0.0, %v1270
      %1272 = vmatmul.f32.gmra.mxu0 %v1069
      %v1273 = vpop.f32.mrf.mxu0
      %v1274 = vadd.f32 0.0, %v1273
      %1275 = vdwg.mxu0
      %1276 = vmatpush.msra.mxu0 %v1234
      %1277 = vmatpush.msra.mxu0 %v1232
      %1278 = vmatpush.msra.mxu0 %v1230
      %1279 = vmatpush.msra.mxu0 %v1228
      %1280 = vmatpush.msra.mxu0 %v1226
      %1281 = vmatpush.msra.mxu0 %v1224
      %1282 = vmatpush.msra.mxu0 %v1222
      %1283 = vmatpush.msra.mxu0 %v1220
      %1284 = vmatpush.msra.mxu0 %v1218
      %1285 = vmatpush.msra.mxu0 %v1216
      %1286 = vmatpush.msra.mxu0 %v1214
      %1287 = vmatpush.msra.mxu0 %v1212
      %1288 = vmatpush.msra.mxu0 %v1210
      %1289 = vmatpush.msra.mxu0 %v1208
      %1290 = vmatpush.msra.mxu0 %v1206
      %1291 = vmatpush.msra.mxu0 %v1204
      %1292 = vmatmul.f32.gmra.mxu0 %v1062
      %v1293 = vpop.f32.mrf.mxu0
      %v1294 = vadd.f32 0.0, %v1293
      %1295 = vmatmul.f32.gmra.mxu0 %v1063
      %v1296 = vpop.f32.mrf.mxu0
      %v1297 = vadd.f32 0.0, %v1296
      %1298 = vmatmul.f32.gmra.mxu0 %v1064
      %v1299 = vpop.f32.mrf.mxu0
      %v1300 = vadd.f32 0.0, %v1299
      %1301 = vmatmul.f32.gmra.mxu0 %v1065
      %v1302 = vpop.f32.mrf.mxu0
      %v1303 = vadd.f32 0.0, %v1302
      %1304 = vmatmul.f32.gmra.mxu0 %v1066
      %v1305 = vpop.f32.mrf.mxu0
      %v1306 = vadd.f32 0.0, %v1305
      %1307 = vmatmul.f32.gmra.mxu0 %v1067
      %v1308 = vpop.f32.mrf.mxu0
      %v1309 = vadd.f32 0.0, %v1308
      %1310 = vmatmul.f32.gmra.mxu0 %v1068
      %v1311 = vpop.f32.mrf.mxu0
      %v1312 = vadd.f32 0.0, %v1311
      %1313 = vmatmul.f32.gmra.mxu0 %v1069
      %v1314 = vpop.f32.mrf.mxu0
      %v1315 = vadd.f32 0.0, %v1314
      %1316 = vdwg.mxu0
      %v1317 = vadd.f32 %v1186, %v1253
      %v1318 = vadd.f32 %v1187, %v1294
      %v1319 = vadd.f32 %v1188, %v1256
      %v1320 = vadd.f32 %v1189, %v1297
      %v1321 = vadd.f32 %v1190, %v1259
      %v1322 = vadd.f32 %v1191, %v1300
      %v1323 = vadd.f32 %v1192, %v1262
      %v1324 = vadd.f32 %v1193, %v1303
      %v1325 = vadd.f32 %v1194, %v1265
      %v1326 = vadd.f32 %v1195, %v1306
      %v1327 = vadd.f32 %v1196, %v1268
      %v1328 = vadd.f32 %v1197, %v1309
      %v1329 = vadd.f32 %v1198, %v1271
      %v1330 = vadd.f32 %v1199, %v1312
      %v1331 = vadd.f32 %v1200, %v1274
      %v1332 = vadd.f32 %v1201, %v1315
      %s1333 = scalar_lea.vmem %s1, 2048
      %v1334 = vld [vmem:[%s1333] sm:$0xff]
      %v1335 = vld [vmem:[%s1333 + $0x8] sm:$0xff]
      %v1336 = vld [vmem:[%s1333 + $0x10] sm:$0xff]
      %v1337 = vld [vmem:[%s1333 + $0x18] sm:$0xff]
      %v1338 = vld [vmem:[%s1333 + $0x20] sm:$0xff]
      %v1339 = vld [vmem:[%s1333 + $0x28] sm:$0xff]
      %v1340 = vld [vmem:[%s1333 + $0x30] sm:$0xff]
      %v1341 = vld [vmem:[%s1333 + $0x38] sm:$0xff]
      %v1342 = vld [vmem:[%s1333 + $0x40] sm:$0xff]
      %v1343 = vld [vmem:[%s1333 + $0x48] sm:$0xff]
      %v1344 = vld [vmem:[%s1333 + $0x50] sm:$0xff]
      %v1345 = vld [vmem:[%s1333 + $0x58] sm:$0xff]
      %v1346 = vld [vmem:[%s1333 + $0x60] sm:$0xff]
      %v1347 = vld [vmem:[%s1333 + $0x68] sm:$0xff]
      %v1348 = vld [vmem:[%s1333 + $0x70] sm:$0xff]
      %v1349 = vld [vmem:[%s1333 + $0x78] sm:$0xff]
      %v1350 = vld [vmem:[%s1333 + $0x80] sm:$0xff]
      %v1351 = vld [vmem:[%s1333 + $0x88] sm:$0xff]
      %v1352 = vld [vmem:[%s1333 + $0x90] sm:$0xff]
      %v1353 = vld [vmem:[%s1333 + $0x98] sm:$0xff]
      %v1354 = vld [vmem:[%s1333 + $0xa0] sm:$0xff]
      %v1355 = vld [vmem:[%s1333 + $0xa8] sm:$0xff]
      %v1356 = vld [vmem:[%s1333 + $0xb0] sm:$0xff]
      %v1357 = vld [vmem:[%s1333 + $0xb8] sm:$0xff]
      %v1358 = vld [vmem:[%s1333 + $0xc0] sm:$0xff]
      %v1359 = vld [vmem:[%s1333 + $0xc8] sm:$0xff]
      %v1360 = vld [vmem:[%s1333 + $0xd0] sm:$0xff]
      %v1361 = vld [vmem:[%s1333 + $0xd8] sm:$0xff]
      %v1362 = vld [vmem:[%s1333 + $0xe0] sm:$0xff]
      %v1363 = vld [vmem:[%s1333 + $0xe8] sm:$0xff]
      %v1364 = vld [vmem:[%s1333 + $0xf0] sm:$0xff]
      %v1365 = vld [vmem:[%s1333 + $0xf8] sm:$0xff]
      %1366 = vmatpush.msra.mxu0 %v1364
      %1367 = vmatpush.msra.mxu0 %v1362
      %1368 = vmatpush.msra.mxu0 %v1360
      %1369 = vmatpush.msra.mxu0 %v1358
      %1370 = vmatpush.msra.mxu0 %v1356
      %1371 = vmatpush.msra.mxu0 %v1354
      %1372 = vmatpush.msra.mxu0 %v1352
      %1373 = vmatpush.msra.mxu0 %v1350
      %1374 = vmatpush.msra.mxu0 %v1348
      %1375 = vmatpush.msra.mxu0 %v1346
      %1376 = vmatpush.msra.mxu0 %v1344
      %1377 = vmatpush.msra.mxu0 %v1342
      %1378 = vmatpush.msra.mxu0 %v1340
      %1379 = vmatpush.msra.mxu0 %v1338
      %1380 = vmatpush.msra.mxu0 %v1336
      %1381 = vmatpush.msra.mxu0 %v1334
      %1382 = vmatmul.f32.gmra.mxu0 %v1063
      %v1383 = vpop.f32.mrf.mxu0
      %v1384 = vadd.f32 0.0, %v1383
      %1385 = vmatmul.f32.gmra.mxu0 %v1064
      %v1386 = vpop.f32.mrf.mxu0
      %v1387 = vadd.f32 0.0, %v1386
      %1388 = vmatmul.f32.gmra.mxu0 %v1065
      %v1389 = vpop.f32.mrf.mxu0
      %v1390 = vadd.f32 0.0, %v1389
      %1391 = vmatmul.f32.gmra.mxu0 %v1066
      %v1392 = vpop.f32.mrf.mxu0
      %v1393 = vadd.f32 0.0, %v1392
      %1394 = vmatmul.f32.gmra.mxu0 %v1067
      %v1395 = vpop.f32.mrf.mxu0
      %v1396 = vadd.f32 0.0, %v1395
      %1397 = vmatmul.f32.gmra.mxu0 %v1068
      %v1398 = vpop.f32.mrf.mxu0
      %v1399 = vadd.f32 0.0, %v1398
      %1400 = vmatmul.f32.gmra.mxu0 %v1069
      %v1401 = vpop.f32.mrf.mxu0
      %v1402 = vadd.f32 0.0, %v1401
      %1403 = vmatmul.f32.gmra.mxu0 %v1070
      %v1404 = vpop.f32.mrf.mxu0
      %v1405 = vadd.f32 0.0, %v1404
      %1406 = vdwg.mxu0
      %1407 = vmatpush.msra.mxu0 %v1365
      %1408 = vmatpush.msra.mxu0 %v1363
      %1409 = vmatpush.msra.mxu0 %v1361
      %1410 = vmatpush.msra.mxu0 %v1359
      %1411 = vmatpush.msra.mxu0 %v1357
      %1412 = vmatpush.msra.mxu0 %v1355
      %1413 = vmatpush.msra.mxu0 %v1353
      %1414 = vmatpush.msra.mxu0 %v1351
      %1415 = vmatpush.msra.mxu0 %v1349
      %1416 = vmatpush.msra.mxu0 %v1347
      %1417 = vmatpush.msra.mxu0 %v1345
      %1418 = vmatpush.msra.mxu0 %v1343
      %1419 = vmatpush.msra.mxu0 %v1341
      %1420 = vmatpush.msra.mxu0 %v1339
      %1421 = vmatpush.msra.mxu0 %v1337
      %1422 = vmatpush.msra.mxu0 %v1335
      %1423 = vmatmul.f32.gmra.mxu0 %v1063
      %v1424 = vpop.f32.mrf.mxu0
      %v1425 = vadd.f32 0.0, %v1424
      %1426 = vmatmul.f32.gmra.mxu0 %v1064
      %v1427 = vpop.f32.mrf.mxu0
      %v1428 = vadd.f32 0.0, %v1427
      %1429 = vmatmul.f32.gmra.mxu0 %v1065
      %v1430 = vpop.f32.mrf.mxu0
      %v1431 = vadd.f32 0.0, %v1430
      %1432 = vmatmul.f32.gmra.mxu0 %v1066
      %v1433 = vpop.f32.mrf.mxu0
      %v1434 = vadd.f32 0.0, %v1433
      %1435 = vmatmul.f32.gmra.mxu0 %v1067
      %v1436 = vpop.f32.mrf.mxu0
      %v1437 = vadd.f32 0.0, %v1436
      %1438 = vmatmul.f32.gmra.mxu0 %v1068
      %v1439 = vpop.f32.mrf.mxu0
      %v1440 = vadd.f32 0.0, %v1439
      %1441 = vmatmul.f32.gmra.mxu0 %v1069
      %v1442 = vpop.f32.mrf.mxu0
      %v1443 = vadd.f32 0.0, %v1442
      %1444 = vmatmul.f32.gmra.mxu0 %v1070
      %v1445 = vpop.f32.mrf.mxu0
      %v1446 = vadd.f32 0.0, %v1445
      %1447 = vdwg.mxu0
      %v1448 = vadd.f32 %v1317, %v1384
      %v1449 = vadd.f32 %v1318, %v1425
      %v1450 = vadd.f32 %v1319, %v1387
      %v1451 = vadd.f32 %v1320, %v1428
      %v1452 = vadd.f32 %v1321, %v1390
      %v1453 = vadd.f32 %v1322, %v1431
      %v1454 = vadd.f32 %v1323, %v1393
      %v1455 = vadd.f32 %v1324, %v1434
      %v1456 = vadd.f32 %v1325, %v1396
      %v1457 = vadd.f32 %v1326, %v1437
      %v1458 = vadd.f32 %v1327, %v1399
      %v1459 = vadd.f32 %v1328, %v1440
      %v1460 = vadd.f32 %v1329, %v1402
      %v1461 = vadd.f32 %v1330, %v1443
      %v1462 = vadd.f32 %v1331, %v1405
      %v1463 = vadd.f32 %v1332, %v1446
      %1464 = vst [vmem:[%s113] sm:$0xff] %v1448
      %1465 = vst [vmem:[%s113 + $0x8] sm:$0xff] %v1449
      %1466 = vst [vmem:[%s113 + $0x10] sm:$0xff] %v1450
      %1467 = vst [vmem:[%s113 + $0x18] sm:$0xff] %v1451
      %1468 = vst [vmem:[%s113 + $0x20] sm:$0xff] %v1452
      %1469 = vst [vmem:[%s113 + $0x28] sm:$0xff] %v1453
      %1470 = vst [vmem:[%s113 + $0x30] sm:$0xff] %v1454
      %1471 = vst [vmem:[%s113 + $0x38] sm:$0xff] %v1455
      %1472 = vst [vmem:[%s113 + $0x40] sm:$0xff] %v1456
      %1473 = vst [vmem:[%s113 + $0x48] sm:$0xff] %v1457
      %1474 = vst [vmem:[%s113 + $0x50] sm:$0xff] %v1458
      %1475 = vst [vmem:[%s113 + $0x58] sm:$0xff] %v1459
      %1476 = vst [vmem:[%s113 + $0x60] sm:$0xff] %v1460
      %1477 = vst [vmem:[%s113 + $0x68] sm:$0xff] %v1461
      %1478 = vst [vmem:[%s113 + $0x70] sm:$0xff] %v1462
      %1479 = vst [vmem:[%s113 + $0x78] sm:$0xff] %v1463
      %s1480 = sadd.s32 %s17, %s18
      %p1481 = scmp.lt.s32.totalorder %s1480, 1
      %s1482 = scalar_select %p1481, %s1480, 1
      %s1483 = smul.addr %s1482, 16
      %s1484 = smul.addr %s1483, 8
      %s1485 = scalar_lea.vmem %s2, %s1484
      // Predicated region
      $region77: #{forward.1} parent=23 // pred_check
        %p1486 = pneg %p66
      $region78: #{forward.1} parent=23 // pred_check_branch
        %1488 = sbr.rel (%p1486) target = $region80
      $region79: #{forward.1} parent=23 // pred_region
        %s1489 = sadd.s32 %s17, %s18
      $region80: #{forward.1} parent=23 // pred_fallthru
        _
    $region24: #{forward.1} parent=5 // pred_fallthru
      _
    %p1490 = scmp.le.s32.totalorder 2, %s8
    // Predicated region
    $region81: #{forward.1} parent=5 // pred_check
      %p1491 = pneg %p1490
    $region82: #{forward.1} parent=5 // pred_check_branch
      %1493 = sbr.rel (%p1491) target = $region84
    $region83: #{forward.1} parent=5 // pred_region
      %s1494 = ssub.s32 %s8, 2
      // Predicated region
      $region85: #{forward.1} parent=83 // pred_check
        %p1495 = pneg %p72
      $region86: #{forward.1} parent=83 // pred_check_branch
        %1497 = sbr.rel (%p1495) target = $region88
      $region87: #{forward.1} parent=83 // pred_region
        %s1498 = sadd.s32 %s19, %s20
        %p1499 = scmp.lt.s32.totalorder %s1498, 1
        %s1500 = scalar_select %p1499, %s1498, 1
        %s1501 = smul.addr %s1500, 16
        %s1502 = smul.addr %s1501, 8
        %s1503 = scalar_lea.vmem %s2, %s1502
      $region88: #{forward.1} parent=83 // pred_fallthru
        _
    $region84: #{forward.1} parent=5 // pred_fallthru
      _
  $region6: #{forward.1} parent=0 // loop_footer
    %s12 = sadd.s32 1, %s8
  $region7: #{forward.1} parent=0 // loop_footer_branch
    %7 = sbr.rel target = $region3
  $region8: #{forward.1} parent=0 // loop_exit
    _
  %1504 = vsyncmov [#allocation3]
  %s1505 = vpop.sfrf %1504
  %p1506 = scmp.eq.s32.totalorder %s1505, 0
  %p1507 = pneg %p1506
  %1509 = shalt.err (%p1507)
  %s1510 = scalar_lea.sflag [#allocation3], 1
  %1511 = vsyncmov %s1510
  %s1512 = vpop.sfrf %1511
  %p1513 = scmp.eq.s32.totalorder %s1512, 0
  %p1514 = pneg %p1513
  %1516 = shalt.err (%p1514)

</llo_original>
